<compile_context>
chip_gen: v7x
topology: tpu7x:2x2x1
jax: 0.10.0
libtpu: 0.0.40
codegen_flags: <defaults>
</compile_context>

<pallas_src>
from functools import partial

import jax
import jax.numpy as jnp
from jax.experimental import pallas as pl
from jax.experimental.pallas import tpu as pltpu


# ------------------------------ small helpers --------------------------------
def _round_up(x, m):
    return (x + m - 1) // m * m


def _cdiv(a, b):
    return (a + b - 1) // b


def _vmem_budget_bytes():
    """Generation-aware scoped-VMEM budget (v7x: 64 MiB physical; v5e/v6e: 128)."""
    try:
        cap = int(pltpu.get_tpu_info().vmem_capacity_bytes)
    except Exception:
        cap = 64 * 1024 * 1024
    return max(32 * 1024 * 1024, min((cap * 6) // 10, 100 * 1024 * 1024))


def _compiler_params(dimension_semantics, vmem_limit_bytes):
    return pltpu.CompilerParams(dimension_semantics=dimension_semantics,
                                vmem_limit_bytes=int(vmem_limit_bytes))


# ----------------------------- Pallas kernels --------------------------------
def _conv_kernel(xa_ref, xb_ref, w_ref, b_ref, o_ref, *, ws, neg_slope):
    """Fused im2col + transposed GEMM + bias + LeakyReLU for one lane-chunk.

    xa_ref: (4*Cin_p, tc)      space-to-depth packed input, this chunk
    xb_ref: (4*Cin_p, tb)      start of the next chunk (shift-window overlap)
    w_ref : (Cout, 4*4*Cin_p)  conv weights, rows ordered [shift s][pi, pj, ci]
    b_ref : (Cout, 1) f32
    o_ref : (Cout, tc)         lane-dense output chunk
    """
    tc = xa_ref.shape[-1]
    xw = jnp.concatenate([xa_ref[...], xb_ref[...]], axis=1)        # (4Cp, tc+tb)
    # Four shifted window slabs stacked along the contraction dim -> one dot.
    xbig = jnp.concatenate(
        [xw[:, off:off + tc] for off in (0, 1, ws, ws + 1)], axis=0)
    acc = jnp.dot(w_ref[...], xbig, preferred_element_type=jnp.float32)
    acc = acc + b_ref[...]
    acc = jnp.where(acc >= 0.0, acc, jnp.float32(neg_slope) * acc)
    o_ref[...] = acc.astype(o_ref.dtype)


def _regressor_kernel(x_ref, w1_ref, b1_ref, w2_ref, o_ref, acc_ref, *, neg_slope):
    """K-tiled fc1 accumulation; at the last K step: bias + LeakyReLU + partial fc2."""
    k = pl.program_id(2)

    @pl.when(k == 0)
    def _init():
        acc_ref[...] = jnp.zeros_like(acc_ref)

    acc_ref[...] += jnp.dot(x_ref[...], w1_ref[...],
                            preferred_element_type=jnp.float32)

    @pl.when(k == pl.num_programs(2) - 1)
    def _finalize():
        h = acc_ref[...] + b1_ref[...]
        h = jnp.where(h >= 0.0, h, jnp.float32(neg_slope) * h)
        o_ref[0] = jnp.dot(h.astype(w2_ref.dtype), w2_ref[...],
                           preferred_element_type=jnp.float32)


# ------------------------------ wrappers --------------------------------------
def conv_lrelu(a_cnhw, w_hwio, b, *, neg_slope=0.2, tc_target=4096):
    """Conv2d(k=4, s=2, p=1) + LeakyReLU, fused im2col, one pallas_call.

    a_cnhw: (Cin, N, H, W) bf16 activations (channel-major planes).
    Returns (Cout, N, H//2, W//2) bf16.
    """
    C, N, H, W = a_cnhw.shape
    assert H % 2 == 0 and W % 2 == 0, (H, W)
    Cout = w_hwio.shape[-1]
    Ho, Wo = H // 2, W // 2
    Hs, Ws = Ho + 1, Wo + 1
    C4 = 4 * C
    C4p = _round_up(C4, 16)              # bf16 sublane packing
    Lvalid = N * Hs * Ws                 # flattened s2d cell count (== output lanes)

    # --- space-to-depth pack: rows = (pi, pj, ci), lanes = (n, hs, ws) -------
    # Single cheap XLA pass (~1x the data) instead of a 4x im2col matrix.
    xp = jnp.pad(a_cnhw.astype(jnp.bfloat16), ((0, 0), (0, 0), (1, 1), (1, 1)))
    xp = xp.reshape(C, N, Hs, 2, Ws, 2)
    xcat = jnp.transpose(xp, (3, 5, 0, 1, 2, 4)).reshape(C4, Lvalid)

    # --- chunking of the flattened output-position (lane) axis ---------------
    tb = _round_up(Ws + 2, 128)                       # overlap window (>= Ws+1)
    units = max(1, min(max(tc_target, tb) // tb, _cdiv(Lvalid, tb)))
    tc = units * tb
    n_chunks = _cdiv(Lvalid, tc)
    Lout = n_chunks * tc
    Lin = Lout + tb
    xcat = jnp.pad(xcat, ((0, C4p - C4), (0, Lin - Lvalid)))

    # --- weights: (Cout, 4*C4p); contraction rows ordered [shift][pi, pj, ci] -
    w6 = w_hwio.reshape(2, 2, 2, 2, C, Cout)          # (dr, pi, dc, pj, ci, co)
    w6 = jnp.transpose(w6, (0, 2, 1, 3, 4, 5))        # (dr, dc, pi, pj, ci, co)
    w3 = jnp.pad(w6.reshape(4, C4, Cout), ((0, 0), (0, C4p - C4), (0, 0)))
    wbig = jnp.transpose(w3, (2, 0, 1)).reshape(Cout, 4 * C4p).astype(jnp.bfloat16)
    bb = b.reshape(Cout, 1).astype(jnp.float32)

    rfac = tc // tb
    flops = 2 * Cout * 4 * C4p * Lout
    bytes_acc = 2 * C4p * Lin * 2 + Cout * Lout * 2 + Cout * 4 * C4p * 2

    ycat = pl.pallas_call(
        partial(_conv_kernel, ws=Ws, neg_slope=neg_slope),
        out_shape=jax.ShapeDtypeStruct((Cout, Lout), jnp.bfloat16),
        grid_spec=pltpu.PrefetchScalarGridSpec(
            num_scalar_prefetch=0,
            grid=(n_chunks,),
            in_specs=[
                pl.BlockSpec((C4p, tc), lambda c: (0, c)),
                pl.BlockSpec((C4p, tb), lambda c: (0, (c + 1) * rfac)),
                pl.BlockSpec((Cout, 4 * C4p), lambda c: (0, 0)),
                pl.BlockSpec((Cout, 1), lambda c: (0, 0)),
            ],
            out_specs=pl.BlockSpec((Cout, tc), lambda c: (0, c)),
        ),
        compiler_params=_compiler_params(("parallel",), _vmem_budget_bytes()),
        cost_estimate=pl.CostEstimate(flops=flops, transcendentals=0,
                                      bytes_accessed=bytes_acc),
    )(xcat, xcat, wbig, bb)

    # (Cout, Lout) -> (Cout, N, Ho, Wo); garbage (ws == Wo) columns dropped.
    y = ycat[:, :Lvalid].reshape(Cout, N, Hs, Ws)[:, :, :Ho, :Wo]
    return y


def fused_regressor(x_flat, fc1_w, fc1_b, fc2_w, fc2_b, *, neg_slope=0.01):
    """out = leaky_relu(x @ fc1_w + fc1_b, 0.01) @ fc2_w + fc2_b, one kernel."""
    M, K = x_flat.shape
    K2, N1 = fc1_w.shape
    assert K == K2, (K, K2)
    N2 = fc2_w.shape[1]
    N2P = 128                                  # lane-dense padded fc2 output width

    budget = _vmem_budget_bytes()
    NJ = 2 if N1 % 256 == 0 else 1             # v7x: both TCs get a 128-wide half
    NH = N1 // NJ

    tm = max(16, _round_up(min(M, 256), 16))   # bf16 sublane-aware rounding
    Mp = _round_up(M, tm)
    # Budget-aware K tile (double-buffered w1 block dominates VMEM); >= 512.
    tk_cap = max(512, min(8192, ((budget // 4) // (NH * 2 * 2)) // 128 * 128))
    if K <= tk_cap:
        tk = _round_up(K, 128)
        Kp = tk
    else:
        tk = tk_cap
        Kp = _round_up(K, tk)

    x = x_flat.astype(jnp.bfloat16)
    if (Mp, Kp) != (M, K):
        x = jnp.pad(x, ((0, Mp - M), (0, Kp - K)))
    w1 = fc1_w.astype(jnp.bfloat16)
    if Kp != K:
        w1 = jnp.pad(w1, ((0, Kp - K), (0, 0)))
    b1 = fc1_b.reshape(1, N1).astype(jnp.float32)
    w2 = jnp.pad(fc2_w, ((0, 0), (0, N2P - N2))).astype(jnp.bfloat16)

    grid = (Mp // tm, NJ, Kp // tk)
    flops = 2 * Mp * N1 * Kp + 2 * Mp * N1 * N2P
    bytes_acc = Mp * Kp * 2 + Kp * N1 * 2 + N1 * N2P * 2 + NJ * Mp * N2P * 4

    partials = pl.pallas_call(
        partial(_regressor_kernel, neg_slope=neg_slope),
        out_shape=jax.ShapeDtypeStruct((NJ, Mp, N2P), jnp.float32),
        grid_spec=pltpu.PrefetchScalarGridSpec(
            num_scalar_prefetch=0,
            grid=grid,
            in_specs=[
                pl.BlockSpec((tm, tk), lambda i, j, k: (i, k)),
                pl.BlockSpec((tk, NH), lambda i, j, k: (k, j)),
                pl.BlockSpec((1, NH), lambda i, j, k: (0, j)),
                pl.BlockSpec((NH, N2P), lambda i, j, k: (j, 0)),
            ],
            out_specs=pl.BlockSpec((1, tm, N2P), lambda i, j, k: (j, i, 0)),
            scratch_shapes=[pltpu.VMEM((tm, NH), jnp.float32)],
        ),
        compiler_params=_compiler_params(("parallel", "parallel", "arbitrary"),
                                         budget),
        cost_estimate=pl.CostEstimate(flops=flops, transcendentals=0,
                                      bytes_accessed=bytes_acc),
    )(x, w1, b1, w2)

    out = partials.sum(axis=0)[:M, :N2] + fc2_b.reshape(1, N2)
    return out


# ------------------------------ model glue ------------------------------------
def init_params(key, nc=3, ndf=4, h=32, w=32):
    keys = jax.random.split(key, 8)
    feat = ndf * 4 * (h // 8) * (w // 8)   # module hardcodes ndf*4*128*256 (1024x2048)

    def u(k, shape, fan_in):
        lim = 1.0 / jnp.sqrt(jnp.float32(fan_in))
        return jax.random.uniform(k, shape, jnp.float32, -lim, lim)

    return {
        # conv weights in HWIO
        "w1": u(keys[0], (4, 4, nc, ndf), nc * 16),
        "b1": u(keys[1], (ndf,), nc * 16),
        "w2": u(keys[2], (4, 4, ndf, ndf * 2), ndf * 16),
        "b2": u(keys[3], (ndf * 2,), ndf * 16),
        "w3": u(keys[4], (4, 4, ndf * 2, ndf * 4), ndf * 2 * 16),  # bias=False
        # linear weights stored (in, out)
        "fc1_w": u(keys[5], (feat, 256), feat),
        "fc1_b": u(keys[6], (256,), feat),
        "fc2_w": u(keys[7], (256, 1), 256),
        "fc2_b": jnp.zeros((1,), jnp.float32),
    }


def forward(params, x_nchw):
    x = x_nchw.astype(jnp.float32)
    x = jnp.transpose(x, (1, 0, 2, 3)).astype(jnp.bfloat16)     # NCHW -> CNHW planes
    x = conv_lrelu(x, params["w1"], params["b1"], neg_slope=0.2)
    x = conv_lrelu(x, params["w2"], params["b2"], neg_slope=0.2)
    x = conv_lrelu(x, params["w3"],
                   jnp.zeros((params["w3"].shape[-1],), jnp.float32), neg_slope=0.2)
    c3, n, h3, w3 = x.shape
    # (C,N,H,W) -> per-image NCHW flatten: exactly torch's x.view(N, -1).
    x_flat = jnp.transpose(x, (1, 0, 2, 3)).reshape(n, c3 * h3 * w3)
    return fused_regressor(x_flat, params["fc1_w"], params["fc1_b"],
                           params["fc2_w"], params["fc2_b"], neg_slope=0.01)


# --------------------------- pure-JAX references ------------------------------
def reference_forward_f32(params, x_nchw):
    """Full-f32 torch-semantics reference."""
    x = jnp.transpose(x_nchw.astype(jnp.float32), (0, 2, 3, 1))

    def conv(x, w, b, slope):
        y = jax.lax.conv_general_dilated(
            x, w, window_strides=(2, 2), padding=((1, 1), (1, 1)),
            dimension_numbers=("NHWC", "HWIO", "NHWC"))
        y = y + b.reshape(1, 1, 1, -1)
        return jnp.where(y >= 0, y, slope * y)

    x = conv(x, params["w1"], params["b1"], 0.2)
    x = conv(x, params["w2"], params["b2"], 0.2)
    x = conv(x, params["w3"], jnp.zeros((params["w3"].shape[-1],), jnp.float32), 0.2)
    x = jnp.transpose(x, (0, 3, 1, 2)).reshape(x.shape[0], -1)
    h = x @ params["fc1_w"] + params["fc1_b"]
    h = jnp.where(h >= 0, h, 0.01 * h)
    return h @ params["fc2_w"] + params["fc2_b"]


def reference_forward_matched(params, x_nchw):
    """Reference mirroring the kernels' precision contract: bf16 operands, f32 accum."""
    x = jnp.transpose(x_nchw.astype(jnp.float32), (0, 2, 3, 1)).astype(jnp.bfloat16)

    def conv(x, w, b, slope):
        y = jax.lax.conv_general_dilated(
            x, w.astype(jnp.bfloat16), window_strides=(2, 2),
            padding=((1, 1), (1, 1)),
            dimension_numbers=("NHWC", "HWIO", "NHWC"),
            preferred_element_type=jnp.float32)
        y = y + b.reshape(1, 1, 1, -1).astype(jnp.float32)
        y = jnp.where(y >= 0, y, slope * y)
        return y.astype(jnp.bfloat16)

    x = conv(x, params["w1"], params["b1"], 0.2)
    x = conv(x, params["w2"], params["b2"], 0.2)
    x = conv(x, params["w3"], jnp.zeros((params["w3"].shape[-1],), jnp.float32), 0.2)
    xf = jnp.transpose(x, (0, 3, 1, 2)).reshape(x.shape[0], -1)
    h = jnp.dot(xf.astype(jnp.bfloat16), params["fc1_w"].astype(jnp.bfloat16),
                preferred_element_type=jnp.float32) + params["fc1_b"]
    h = jnp.where(h >= 0, h, 0.01 * h)
    out = jnp.dot(h.astype(jnp.bfloat16), params["fc2_w"].astype(jnp.bfloat16),
                  preferred_element_type=jnp.float32) + params["fc2_b"]
    return out


if __name__ == "__main__":
    key = jax.random.PRNGKey(0)
    k_param, k_x = jax.random.split(key)

    N, NC, NDF, H, W = 2, 3, 4, 32, 32
    params = init_params(k_param, nc=NC, ndf=NDF, h=H, w=W)
    x = jax.random.normal(k_x, (N, NC, H, W), jnp.float32)

    fwd = jax.jit(forward)
    out = jax.block_until_ready(fwd(params, x))
    assert out.shape == (N, 1), out.shape

    ref_matched = jax.block_until_ready(reference_forward_matched(params, x))
    ref_f32 = jax.block_until_ready(reference_forward_f32(params, x))

    # Tight check against a precision-matched (bf16-operand) reference ...
    assert jnp.allclose(out, ref_matched, atol=5e-3, rtol=1e-2), (out, ref_matched)
    # ... and a looser sanity check against the full-f32 torch-semantics reference.
    assert jnp.allclose(out, ref_f32, atol=5e-2, rtol=5e-2), (out, ref_f32)

    print("KERNEL_OK")
</pallas_src>

<mosaic_0001>
module attributes {stable_mosaic.version = 11 : i64} {
  func.func @_conv_kernel(%arg0: i32, %arg1: memref<16x640xbf16, #tpu.memory_space<vmem>>, %arg2: memref<16x128xbf16, #tpu.memory_space<vmem>>, %arg3: memref<4x64xbf16, #tpu.memory_space<vmem>>, %arg4: memref<4x1xf32, #tpu.memory_space<vmem>>, %arg5: memref<4x640xbf16, #tpu.memory_space<vmem>>) attributes {dimension_semantics = [#tpu.dimension_semantics<parallel>], iteration_bounds = array<i64: 1>, scalar_prefetch = 0 : i64, scratch_operands = 0 : i64, tpu.core_type = #tpu.core_type<tc>, window_params = [{transform_indices = @transform_0, window_bounds = array<i64: 16, 640>}, {transform_indices = @transform_1, window_bounds = array<i64: 16, 128>}, {pipeline_mode = #tpu.pipeline_mode<synchronous>, transform_indices = @transform_2, window_bounds = array<i64: 4, 64>}, {pipeline_mode = #tpu.pipeline_mode<synchronous>, transform_indices = @transform_3, window_bounds = array<i64: 4, 1>}, {transform_indices = @transform_4, window_bounds = array<i64: 4, 640>}]} {
    %c0 = arith.constant 0 : index
    %c0_0 = arith.constant 0 : index
    %0 = vector.load %arg1[%c0, %c0_0] : memref<16x640xbf16, #tpu.memory_space<vmem>>, vector<16x640xbf16>
    %c0_1 = arith.constant 0 : index
    %c0_2 = arith.constant 0 : index
    %1 = vector.load %arg2[%c0_1, %c0_2] : memref<16x128xbf16, #tpu.memory_space<vmem>>, vector<16x128xbf16>
    %2 = tpu.concatenate %0, %1 in 1 : vector<16x640xbf16>, vector<16x128xbf16> -> vector<16x768xbf16>
    %3 = vector.extract_strided_slice %2 {offsets = [0, 0], sizes = [16, 640], strides = [1, 1]} : vector<16x768xbf16> to vector<16x640xbf16>
    %4 = vector.extract_strided_slice %2 {offsets = [0, 1], sizes = [16, 640], strides = [1, 1]} : vector<16x768xbf16> to vector<16x640xbf16>
    %5 = vector.extract_strided_slice %2 {offsets = [0, 17], sizes = [16, 640], strides = [1, 1]} : vector<16x768xbf16> to vector<16x640xbf16>
    %6 = vector.extract_strided_slice %2 {offsets = [0, 18], sizes = [16, 640], strides = [1, 1]} : vector<16x768xbf16> to vector<16x640xbf16>
    %7 = tpu.concatenate %3, %4, %5, %6 in 0 : vector<16x640xbf16>, vector<16x640xbf16>, vector<16x640xbf16>, vector<16x640xbf16> -> vector<64x640xbf16>
    %c0_3 = arith.constant 0 : index
    %c0_4 = arith.constant 0 : index
    %8 = vector.load %arg3[%c0_3, %c0_4] : memref<4x64xbf16, #tpu.memory_space<vmem>>, vector<4x64xbf16>
    %cst = arith.constant dense<0.000000e+00> : vector<4x640xf32>
    %9 = tpu.matmul %8, %7, %cst {dimension_numbers = #tpu.dot_dimension_numbers<[1], [0], [0], [1], [0, 0, 1, 1], [], []>} : vector<4x64xbf16>, vector<64x640xbf16>, vector<4x640xf32> -> vector<4x640xf32>
    %c0_5 = arith.constant 0 : index
    %c0_6 = arith.constant 0 : index
    %10 = vector.load %arg4[%c0_5, %c0_6] : memref<4x1xf32, #tpu.memory_space<vmem>>, vector<4x1xf32>
    %11 = vector.broadcast %10 : vector<4x1xf32> to vector<4x640xf32>
    %12 = arith.addf %9, %11 : vector<4x640xf32>
    %cst_7 = arith.constant 0.000000e+00 : f32
    %13 = vector.broadcast %cst_7 : f32 to vector<4x640xf32>
    %14 = arith.cmpf oge, %12, %13 : vector<4x640xf32>
    %cst_8 = arith.constant 2.000000e-01 : f32
    %15 = vector.broadcast %cst_8 : f32 to vector<4x640xf32>
    %16 = arith.mulf %15, %12 : vector<4x640xf32>
    %17 = arith.select %14, %12, %16 : vector<4x640xi1>, vector<4x640xf32>
    %18 = arith.truncf %17 : vector<4x640xf32> to vector<4x640xbf16>
    %c0_9 = arith.constant 0 : index
    %c0_10 = arith.constant 0 : index
    %19 = vector.load %arg5[%c0_9, %c0_10] : memref<4x640xbf16, #tpu.memory_space<vmem>>, vector<4x640xbf16>
    tpu.vector_store %arg5[%c0_9, %c0_10], %18 {strides = array<i32>} : memref<4x640xbf16, #tpu.memory_space<vmem>>, vector<4x640xbf16>,
    return
  }
  func.func @transform_0(%arg0: i32) -> (i32, i32) {
    %c0_i32 = arith.constant 0 : i32
    %c0_i32_0 = arith.constant 0 : i32
    return %c0_i32, %arg0 : i32, i32
  }
  func.func @transform_1(%arg0: i32) -> (i32, i32) {
    %c1_i32 = arith.constant 1 : i32
    %0 = arith.addi %arg0, %c1_i32 : i32
    %c5_i32 = arith.constant 5 : i32
    %1 = arith.muli %0, %c5_i32 : i32
    %c0_i32 = arith.constant 0 : i32
    %c0_i32_0 = arith.constant 0 : i32
    return %c0_i32, %1 : i32, i32
  }
  func.func @transform_2(%arg0: i32) -> (i32, i32) {
    %c0_i32 = arith.constant 0 : i32
    %c0_i32_0 = arith.constant 0 : i32
    %c0_i32_1 = arith.constant 0 : i32
    return %c0_i32, %c0_i32_0 : i32, i32
  }
  func.func @transform_3(%arg0: i32) -> (i32, i32) {
    %c0_i32 = arith.constant 0 : i32
    %c0_i32_0 = arith.constant 0 : i32
    %c0_i32_1 = arith.constant 0 : i32
    return %c0_i32, %c0_i32_0 : i32, i32
  }
  func.func @transform_4(%arg0: i32) -> (i32, i32) {
    %c0_i32 = arith.constant 0 : i32
    %c0_i32_0 = arith.constant 0 : i32
    return %c0_i32, %arg0 : i32, i32
  }
}

module attributes {stable_mosaic.version = 11 : i64} {
  func.func @_conv_kernel(%arg0: i32, %arg1: memref<16x256xbf16, #tpu.memory_space<vmem>>, %arg2: memref<16x128xbf16, #tpu.memory_space<vmem>>, %arg3: memref<8x64xbf16, #tpu.memory_space<vmem>>, %arg4: memref<8x1xf32, #tpu.memory_space<vmem>>, %arg5: memref<8x256xbf16, #tpu.memory_space<vmem>>) attributes {dimension_semantics = [#tpu.dimension_semantics<parallel>], iteration_bounds = array<i64: 1>, scalar_prefetch = 0 : i64, scratch_operands = 0 : i64, tpu.core_type = #tpu.core_type<tc>, window_params = [{transform_indices = @transform_0, window_bounds = array<i64: 16, 256>}, {transform_indices = @transform_1, window_bounds = array<i64: 16, 128>}, {pipeline_mode = #tpu.pipeline_mode<synchronous>, transform_indices = @transform_2, window_bounds = array<i64: 8, 64>}, {pipeline_mode = #tpu.pipeline_mode<synchronous>, transform_indices = @transform_3, window_bounds = array<i64: 8, 1>}, {transform_indices = @transform_4, window_bounds = array<i64: 8, 256>}]} {
    %c0 = arith.constant 0 : index
    %c0_0 = arith.constant 0 : index
    %0 = vector.load %arg1[%c0, %c0_0] : memref<16x256xbf16, #tpu.memory_space<vmem>>, vector<16x256xbf16>
    %c0_1 = arith.constant 0 : index
    %c0_2 = arith.constant 0 : index
    %1 = vector.load %arg2[%c0_1, %c0_2] : memref<16x128xbf16, #tpu.memory_space<vmem>>, vector<16x128xbf16>
    %2 = tpu.concatenate %0, %1 in 1 : vector<16x256xbf16>, vector<16x128xbf16> -> vector<16x384xbf16>
    %3 = vector.extract_strided_slice %2 {offsets = [0, 0], sizes = [16, 256], strides = [1, 1]} : vector<16x384xbf16> to vector<16x256xbf16>
    %4 = vector.extract_strided_slice %2 {offsets = [0, 1], sizes = [16, 256], strides = [1, 1]} : vector<16x384xbf16> to vector<16x256xbf16>
    %5 = vector.extract_strided_slice %2 {offsets = [0, 9], sizes = [16, 256], strides = [1, 1]} : vector<16x384xbf16> to vector<16x256xbf16>
    %6 = vector.extract_strided_slice %2 {offsets = [0, 10], sizes = [16, 256], strides = [1, 1]} : vector<16x384xbf16> to vector<16x256xbf16>
    %7 = tpu.concatenate %3, %4, %5, %6 in 0 : vector<16x256xbf16>, vector<16x256xbf16>, vector<16x256xbf16>, vector<16x256xbf16> -> vector<64x256xbf16>
    %c0_3 = arith.constant 0 : index
    %c0_4 = arith.constant 0 : index
    %8 = vector.load %arg3[%c0_3, %c0_4] : memref<8x64xbf16, #tpu.memory_space<vmem>>, vector<8x64xbf16>
    %cst = arith.constant dense<0.000000e+00> : vector<8x256xf32>
    %9 = tpu.matmul %8, %7, %cst {dimension_numbers = #tpu.dot_dimension_numbers<[1], [0], [0], [1], [0, 0, 1, 1], [], []>} : vector<8x64xbf16>, vector<64x256xbf16>, vector<8x256xf32> -> vector<8x256xf32>
    %c0_5 = arith.constant 0 : index
    %c0_6 = arith.constant 0 : index
    %10 = vector.load %arg4[%c0_5, %c0_6] : memref<8x1xf32, #tpu.memory_space<vmem>>, vector<8x1xf32>
    %11 = vector.broadcast %10 : vector<8x1xf32> to vector<8x256xf32>
    %12 = arith.addf %9, %11 : vector<8x256xf32>
    %cst_7 = arith.constant 0.000000e+00 : f32
    %13 = vector.broadcast %cst_7 : f32 to vector<8x256xf32>
    %14 = arith.cmpf oge, %12, %13 : vector<8x256xf32>
    %cst_8 = arith.constant 2.000000e-01 : f32
    %15 = vector.broadcast %cst_8 : f32 to vector<8x256xf32>
    %16 = arith.mulf %15, %12 : vector<8x256xf32>
    %17 = arith.select %14, %12, %16 : vector<8x256xi1>, vector<8x256xf32>
    %18 = arith.truncf %17 : vector<8x256xf32> to vector<8x256xbf16>
    %c0_9 = arith.constant 0 : index
    %c0_10 = arith.constant 0 : index
    %19 = vector.load %arg5[%c0_9, %c0_10] : memref<8x256xbf16, #tpu.memory_space<vmem>>, vector<8x256xbf16>
    tpu.vector_store %arg5[%c0_9, %c0_10], %18 {strides = array<i32>} : memref<8x256xbf16, #tpu.memory_space<vmem>>, vector<8x256xbf16>,
    return
  }
  func.func @transform_0(%arg0: i32) -> (i32, i32) {
    %c0_i32 = arith.constant 0 : i32
    %c0_i32_0 = arith.constant 0 : i32
    return %c0_i32, %arg0 : i32, i32
  }
  func.func @transform_1(%arg0: i32) -> (i32, i32) {
    %c1_i32 = arith.constant 1 : i32
    %0 = arith.addi %arg0, %c1_i32 : i32
    %c2_i32 = arith.constant 2 : i32
    %1 = arith.muli %0, %c2_i32 : i32
    %c0_i32 = arith.constant 0 : i32
    %c0_i32_0 = arith.constant 0 : i32
    return %c0_i32, %1 : i32, i32
  }
  func.func @transform_2(%arg0: i32) -> (i32, i32) {
    %c0_i32 = arith.constant 0 : i32
    %c0_i32_0 = arith.constant 0 : i32
    %c0_i32_1 = arith.constant 0 : i32
    return %c0_i32, %c0_i32_0 : i32, i32
  }
  func.func @transform_3(%arg0: i32) -> (i32, i32) {
    %c0_i32 = arith.constant 0 : i32
    %c0_i32_0 = arith.constant 0 : i32
    %c0_i32_1 = arith.constant 0 : i32
    return %c0_i32, %c0_i32_0 : i32, i32
  }
  func.func @transform_4(%arg0: i32) -> (i32, i32) {
    %c0_i32 = arith.constant 0 : i32
    %c0_i32_0 = arith.constant 0 : i32
    return %c0_i32, %arg0 : i32, i32
  }
}

module attributes {stable_mosaic.version = 11 : i64} {
  func.func @_conv_kernel(%arg0: i32, %arg1: memref<32x128xbf16, #tpu.memory_space<vmem>>, %arg2: memref<32x128xbf16, #tpu.memory_space<vmem>>, %arg3: memref<16x128xbf16, #tpu.memory_space<vmem>>, %arg4: memref<16x1xf32, #tpu.memory_space<vmem>>, %arg5: memref<16x128xbf16, #tpu.memory_space<vmem>>) attributes {dimension_semantics = [#tpu.dimension_semantics<parallel>], iteration_bounds = array<i64: 1>, scalar_prefetch = 0 : i64, scratch_operands = 0 : i64, tpu.core_type = #tpu.core_type<tc>, window_params = [{transform_indices = @transform_0, window_bounds = array<i64: 32, 128>}, {transform_indices = @transform_1, window_bounds = array<i64: 32, 128>}, {pipeline_mode = #tpu.pipeline_mode<synchronous>, transform_indices = @transform_2, window_bounds = array<i64: 16, 128>}, {pipeline_mode = #tpu.pipeline_mode<synchronous>, transform_indices = @transform_3, window_bounds = array<i64: 16, 1>}, {transform_indices = @transform_4, window_bounds = array<i64: 16, 128>}]} {
    %c0 = arith.constant 0 : index
    %c0_0 = arith.constant 0 : index
    %0 = vector.load %arg1[%c0, %c0_0] : memref<32x128xbf16, #tpu.memory_space<vmem>>, vector<32x128xbf16>
    %c0_1 = arith.constant 0 : index
    %c0_2 = arith.constant 0 : index
    %1 = vector.load %arg2[%c0_1, %c0_2] : memref<32x128xbf16, #tpu.memory_space<vmem>>, vector<32x128xbf16>
    %2 = tpu.concatenate %0, %1 in 1 : vector<32x128xbf16>, vector<32x128xbf16> -> vector<32x256xbf16>
    %3 = vector.extract_strided_slice %2 {offsets = [0, 0], sizes = [32, 128], strides = [1, 1]} : vector<32x256xbf16> to vector<32x128xbf16>
    %4 = vector.extract_strided_slice %2 {offsets = [0, 1], sizes = [32, 128], strides = [1, 1]} : vector<32x256xbf16> to vector<32x128xbf16>
    %5 = vector.extract_strided_slice %2 {offsets = [0, 5], sizes = [32, 128], strides = [1, 1]} : vector<32x256xbf16> to vector<32x128xbf16>
    %6 = vector.extract_strided_slice %2 {offsets = [0, 6], sizes = [32, 128], strides = [1, 1]} : vector<32x256xbf16> to vector<32x128xbf16>
    %7 = tpu.concatenate %3, %4, %5, %6 in 0 : vector<32x128xbf16>, vector<32x128xbf16>, vector<32x128xbf16>, vector<32x128xbf16> -> vector<128x128xbf16>
    %c0_3 = arith.constant 0 : index
    %c0_4 = arith.constant 0 : index
    %8 = vector.load %arg3[%c0_3, %c0_4] : memref<16x128xbf16, #tpu.memory_space<vmem>>, vector<16x128xbf16>
    %cst = arith.constant dense<0.000000e+00> : vector<16x128xf32>
    %9 = tpu.matmul %8, %7, %cst {dimension_numbers = #tpu.dot_dimension_numbers<[1], [0], [0], [1], [0, 0, 1, 1], [], []>} : vector<16x128xbf16>, vector<128x128xbf16>, vector<16x128xf32> -> vector<16x128xf32>
    %c0_5 = arith.constant 0 : index
    %c0_6 = arith.constant 0 : index
    %10 = vector.load %arg4[%c0_5, %c0_6] : memref<16x1xf32, #tpu.memory_space<vmem>>, vector<16x1xf32>
    %11 = vector.broadcast %10 : vector<16x1xf32> to vector<16x128xf32>
    %12 = arith.addf %9, %11 : vector<16x128xf32>
    %cst_7 = arith.constant 0.000000e+00 : f32
    %13 = vector.broadcast %cst_7 : f32 to vector<16x128xf32>
    %14 = arith.cmpf oge, %12, %13 : vector<16x128xf32>
    %cst_8 = arith.constant 2.000000e-01 : f32
    %15 = vector.broadcast %cst_8 : f32 to vector<16x128xf32>
    %16 = arith.mulf %15, %12 : vector<16x128xf32>
    %17 = arith.select %14, %12, %16 : vector<16x128xi1>, vector<16x128xf32>
    %18 = arith.truncf %17 : vector<16x128xf32> to vector<16x128xbf16>
    %c0_9 = arith.constant 0 : index
    %c0_10 = arith.constant 0 : index
    %19 = vector.load %arg5[%c0_9, %c0_10] : memref<16x128xbf16, #tpu.memory_space<vmem>>, vector<16x128xbf16>
    tpu.vector_store %arg5[%c0_9, %c0_10], %18 {strides = array<i32>} : memref<16x128xbf16, #tpu.memory_space<vmem>>, vector<16x128xbf16>,
    return
  }
  func.func @transform_0(%arg0: i32) -> (i32, i32) {
    %c0_i32 = arith.constant 0 : i32
    %c0_i32_0 = arith.constant 0 : i32
    return %c0_i32, %arg0 : i32, i32
  }
  func.func @transform_1(%arg0: i32) -> (i32, i32) {
    %c1_i32 = arith.constant 1 : i32
    %0 = arith.addi %arg0, %c1_i32 : i32
    %c1_i32_0 = arith.constant 1 : i32
    %1 = arith.muli %0, %c1_i32_0 : i32
    %c0_i32 = arith.constant 0 : i32
    %c0_i32_1 = arith.constant 0 : i32
    return %c0_i32, %1 : i32, i32
  }
  func.func @transform_2(%arg0: i32) -> (i32, i32) {
    %c0_i32 = arith.constant 0 : i32
    %c0_i32_0 = arith.constant 0 : i32
    %c0_i32_1 = arith.constant 0 : i32
    return %c0_i32, %c0_i32_0 : i32, i32
  }
  func.func @transform_3(%arg0: i32) -> (i32, i32) {
    %c0_i32 = arith.constant 0 : i32
    %c0_i32_0 = arith.constant 0 : i32
    %c0_i32_1 = arith.constant 0 : i32
    return %c0_i32, %c0_i32_0 : i32, i32
  }
  func.func @transform_4(%arg0: i32) -> (i32, i32) {
    %c0_i32 = arith.constant 0 : i32
    %c0_i32_0 = arith.constant 0 : i32
    return %c0_i32, %arg0 : i32, i32
  }
}

module attributes {stable_mosaic.version = 11 : i64} {
  func.func @_regressor_kernel(%arg0: i32, %arg1: i32, %arg2: i32, %arg3: memref<16x256xbf16, #tpu.memory_space<vmem>>, %arg4: memref<256x128xbf16, #tpu.memory_space<vmem>>, %arg5: memref<1x128xf32, #tpu.memory_space<vmem>>, %arg6: memref<128x128xbf16, #tpu.memory_space<vmem>>, %arg7: memref<1x16x128xf32, #tpu.memory_space<vmem>>, %arg8: memref<16x128xf32, #tpu.memory_space<vmem>>) attributes {dimension_semantics = [#tpu.dimension_semantics<parallel>, #tpu.dimension_semantics<parallel>, #tpu.dimension_semantics<arbitrary>], iteration_bounds = array<i64: 1, 2, 1>, scalar_prefetch = 0 : i64, scratch_operands = 1 : i64, tpu.core_type = #tpu.core_type<tc>, window_params = [{transform_indices = @transform_0, window_bounds = array<i64: 16, 256>}, {transform_indices = @transform_1, window_bounds = array<i64: 256, 128>}, {transform_indices = @transform_2, window_bounds = array<i64: 1, 128>}, {transform_indices = @transform_3, window_bounds = array<i64: 128, 128>}, {transform_indices = @transform_4, window_bounds = array<i64: 1, 16, 128>}]} {
    %c0_i32 = arith.constant 0 : i32
    %0 = arith.cmpi eq, %arg2, %c0_i32 : i32
    %1 = arith.extui %0 : i1 to i32
    %c0_i32_0 = arith.constant 0 : i32
    %2 = arith.cmpi ne, %1, %c0_i32_0 : i32
    scf.if %2 {
      %cst_10 = arith.constant 0.000000e+00 : f32
      %12 = vector.broadcast %cst_10 : f32 to vector<16x128xf32>
      %c0_11 = arith.constant 0 : index
      %c0_12 = arith.constant 0 : index
      %13 = vector.load %arg8[%c0_11, %c0_12] : memref<16x128xf32, #tpu.memory_space<vmem>>, vector<16x128xf32>
      tpu.vector_store %arg8[%c0_11, %c0_12], %12 {strides = array<i32>} : memref<16x128xf32, #tpu.memory_space<vmem>>, vector<16x128xf32>,
    } else {
    }
    %c0 = arith.constant 0 : index
    %c0_1 = arith.constant 0 : index
    %3 = vector.load %arg8[%c0, %c0_1] : memref<16x128xf32, #tpu.memory_space<vmem>>, vector<16x128xf32>
    %c0_2 = arith.constant 0 : index
    %c0_3 = arith.constant 0 : index
    %4 = vector.load %arg3[%c0_2, %c0_3] : memref<16x256xbf16, #tpu.memory_space<vmem>>, vector<16x256xbf16>
    %c0_4 = arith.constant 0 : index
    %c0_5 = arith.constant 0 : index
    %5 = vector.load %arg4[%c0_4, %c0_5] : memref<256x128xbf16, #tpu.memory_space<vmem>>, vector<256x128xbf16>
    %cst = arith.constant dense<0.000000e+00> : vector<16x128xf32>
    %6 = tpu.matmul %4, %5, %cst {dimension_numbers = #tpu.dot_dimension_numbers<[1], [0], [0], [1], [0, 0, 1, 1], [], []>} : vector<16x256xbf16>, vector<256x128xbf16>, vector<16x128xf32> -> vector<16x128xf32>
    %7 = arith.addf %3, %6 : vector<16x128xf32>
    %c0_6 = arith.constant 0 : index
    %c0_7 = arith.constant 0 : index
    %8 = vector.load %arg8[%c0_6, %c0_7] : memref<16x128xf32, #tpu.memory_space<vmem>>, vector<16x128xf32>
    tpu.vector_store %arg8[%c0_6, %c0_7], %7 {strides = array<i32>} : memref<16x128xf32, #tpu.memory_space<vmem>>, vector<16x128xf32>,
    %c0_i32_8 = arith.constant 0 : i32
    %9 = arith.cmpi eq, %arg2, %c0_i32_8 : i32
    %10 = arith.extui %9 : i1 to i32
    %c0_i32_9 = arith.constant 0 : i32
    %11 = arith.cmpi ne, %10, %c0_i32_9 : i32
    scf.if %11 {
      %c0_10 = arith.constant 0 : index
      %c0_11 = arith.constant 0 : index
      %12 = vector.load %arg8[%c0_10, %c0_11] : memref<16x128xf32, #tpu.memory_space<vmem>>, vector<16x128xf32>
      %c0_12 = arith.constant 0 : index
      %c0_13 = arith.constant 0 : index
      %13 = vector.load %arg5[%c0_12, %c0_13] : memref<1x128xf32, #tpu.memory_space<vmem>>, vector<1x128xf32>
      %14 = vector.broadcast %13 : vector<1x128xf32> to vector<16x128xf32>
      %15 = arith.addf %12, %14 : vector<16x128xf32>
      %cst_14 = arith.constant 0.000000e+00 : f32
      %16 = vector.broadcast %cst_14 : f32 to vector<16x128xf32>
      %17 = arith.cmpf oge, %15, %16 : vector<16x128xf32>
      %cst_15 = arith.constant 0.00999999977 : f32
      %18 = vector.broadcast %cst_15 : f32 to vector<16x128xf32>
      %19 = arith.mulf %18, %15 : vector<16x128xf32>
      %20 = arith.select %17, %15, %19 : vector<16x128xi1>, vector<16x128xf32>
      %21 = arith.truncf %20 : vector<16x128xf32> to vector<16x128xbf16>
      %c0_16 = arith.constant 0 : index
      %c0_17 = arith.constant 0 : index
      %22 = vector.load %arg6[%c0_16, %c0_17] : memref<128x128xbf16, #tpu.memory_space<vmem>>, vector<128x128xbf16>
      %cst_18 = arith.constant dense<0.000000e+00> : vector<16x128xf32>
      %23 = tpu.matmul %21, %22, %cst_18 {dimension_numbers = #tpu.dot_dimension_numbers<[1], [0], [0], [1], [0, 0, 1, 1], [], []>} : vector<16x128xbf16>, vector<128x128xbf16>, vector<16x128xf32> -> vector<16x128xf32>
      %c0_19 = arith.constant 0 : index
      %c0_20 = arith.constant 0 : index
      %c0_21 = arith.constant 0 : index
      %24 = vector.load %arg7[%c0_19, %c0_20, %c0_21] : memref<1x16x128xf32, #tpu.memory_space<vmem>>, vector<1x16x128xf32>
      %25 = vector.shape_cast %24 : vector<1x16x128xf32> to vector<16x128xf32>
      %26 = vector.shape_cast %23 : vector<16x128xf32> to vector<1x16x128xf32>
      tpu.vector_store %arg7[%c0_19, %c0_20, %c0_21], %26 {strides = array<i32>} : memref<1x16x128xf32, #tpu.memory_space<vmem>>, vector<1x16x128xf32>,
    } else {
    }
    return
  }
  func.func @transform_0(%arg0: i32, %arg1: i32, %arg2: i32) -> (i32, i32) {
    %c0_i32 = arith.constant 0 : i32
    return %arg0, %arg2 : i32, i32
  }
  func.func @transform_1(%arg0: i32, %arg1: i32, %arg2: i32) -> (i32, i32) {
    %c0_i32 = arith.constant 0 : i32
    return %arg2, %arg1 : i32, i32
  }
  func.func @transform_2(%arg0: i32, %arg1: i32, %arg2: i32) -> (i32, i32) {
    %c0_i32 = arith.constant 0 : i32
    %c0_i32_0 = arith.constant 0 : i32
    return %c0_i32, %arg1 : i32, i32
  }
  func.func @transform_3(%arg0: i32, %arg1: i32, %arg2: i32) -> (i32, i32) {
    %c0_i32 = arith.constant 0 : i32
    %c0_i32_0 = arith.constant 0 : i32
    return %arg1, %c0_i32 : i32, i32
  }
  func.func @transform_4(%arg0: i32, %arg1: i32, %arg2: i32) -> (i32, i32, i32) {
    %c0_i32 = arith.constant 0 : i32
    %c0_i32_0 = arith.constant 0 : i32
    return %arg1, %arg0, %c0_i32 : i32, i32, i32
  }
}

</mosaic_0001>

<llo_original>
// kernel: forward.4
$region0: #{forward.4}
  #allocation0 [shape = 'u32[]', space=smem, size = 0x4, offset = 0x4, fixed_abs, tag = 'smem constant byte address 0x4 - core index']
  #allocation1 [shape = 'u32[144,128]{1,0:T(1,128)}', space=vmem, size = 0x12000, scoped, tag = 'internal scratch']
  %s0 = inlined_call_operand.vmem [shape: bf16[16,768], index: 0, kind: input, shape index: {}, may-alias: {0,1}]
  %s1 = inlined_call_operand.vmem [shape: bf16[16,768], index: 1, kind: input, shape index: {}, may-alias: {0,1}]
  %s2 = inlined_call_operand.vmem [shape: bf16[4,64], index: 2, kind: input, shape index: {}]
  %s3 = inlined_call_operand.vmem [shape: f32[4,1], index: 3, kind: input, shape index: {}]
  %s4 = inlined_call_operand.vmem [shape: bf16[4,640], index: 4, kind: output, shape index: {}]
  %s5 = sld [smem:[#allocation0]]
  $region93: #{forward.4} parent=0
    _
  %s7 = ssub.s32 1, %s5
  %s8 = scalar_select 0, %s7, %s5
  $region1: #{forward.4} parent=0
    #allocation2 [shape = 'u8[20480]{0}', space=vmem, size = 0x5000, scoped, tag = 'input window, operand 0, single buffered']
    #allocation3 [shape = 'u8[4096]{0}', space=vmem, size = 0x1000, scoped, tag = 'input window, operand 1, single buffered']
    // Predicated region
    $region2: #{forward.4} parent=1 // pred_check
      _
    $region3: #{forward.4} parent=1 // pred_check_branch
      %10 = sbr.rel (0) target = $region5
    $region4: #{forward.4} parent=1 // pred_region
      // Predicated region
      $region6: #{forward.4} parent=4 // pred_check
        _
      $region7: #{forward.4} parent=4 // pred_check_branch
        %12 = sbr.rel (0) target = $region9
      $region8: #{forward.4} parent=4 // pred_region
        // Predicated region
        $region10: #{forward.4} parent=8 // pred_check
          _
        $region11: #{forward.4} parent=8 // pred_check_branch
          %14 = sbr.rel (0) target = $region13
        $region12: #{forward.4} parent=8 // pred_region
          %s15 = scalar_lea.vmem %s0, 16
          %s16 = scalar_lea.vmem [#allocation2], 16
          loop: start=0, step=1, limit=1
          $region14: #{forward.4} parent=12 // loop_pre_header
            _
          $region15: #{forward.4} parent=12 // loop_header
            %s18 = sphi 0, %s22
            %p19 = scmp.ge.s32.totalorder %s18, 1
            %s23 = sphi %s0, %s0
            %s24 = sphi [#allocation2], [#allocation2]
          $region16: #{forward.4} parent=12 // loop_header_branch
            %21 = sbr.rel (%p19) target = $region20
          $region17: #{forward.4} parent=12 // loop_body
            %v25 = vld [vmem:[%s23] sm:$0xff]
            %26 = vst [vmem:[%s24] sm:$0xff] %v25
            %v27 = vld [vmem:[%s23 + $0x8] sm:$0xff]
            %28 = vst [vmem:[%s24 + $0x8] sm:$0xff] %v27
            %v29 = vld [vmem:[%s23 + $0x18] sm:$0xff]
            %30 = vst [vmem:[%s24 + $0x14] sm:$0xff] %v29
            %v31 = vld [vmem:[%s23 + $0x20] sm:$0xff]
            %32 = vst [vmem:[%s24 + $0x1c] sm:$0xff] %v31
          $region18: #{forward.4} parent=12 // loop_footer
            %s22 = sadd.s32 1, %s18
          $region19: #{forward.4} parent=12 // loop_footer_branch
            %17 = sbr.rel target = $region15
          $region20: #{forward.4} parent=12 // loop_exit
            _
          loop: start=0, step=1, limit=1
          $region21: #{forward.4} parent=12 // loop_pre_header
            _
          $region22: #{forward.4} parent=12 // loop_header
            %s35 = sphi 0, %s39
            %p36 = scmp.ge.s32.totalorder %s35, 1
            %s40 = sphi %s15, %s15
            %s41 = sphi %s16, %s16
          $region23: #{forward.4} parent=12 // loop_header_branch
            %38 = sbr.rel (%p36) target = $region27
          $region24: #{forward.4} parent=12 // loop_body
            %v42 = vld [vmem:[%s40] sm:$0xf]
            %43 = vst [vmem:[%s41] sm:$0xf] %v42
            %v44 = vld [vmem:[%s40 + $0x18] sm:$0xf]
            %45 = vst [vmem:[%s41 + $0x14] sm:$0xf] %v44
          $region25: #{forward.4} parent=12 // loop_footer
            %s39 = sadd.s32 1, %s35
          $region26: #{forward.4} parent=12 // loop_footer_branch
            %34 = sbr.rel target = $region22
          $region27: #{forward.4} parent=12 // loop_exit
            _
        $region13: #{forward.4} parent=8 // pred_fallthru
          _
      $region9: #{forward.4} parent=4 // pred_fallthru
        _
      %46 = vnop
    $region5: #{forward.4} parent=1 // pred_fallthru
      _
    // Predicated region
    $region28: #{forward.4} parent=1 // pred_check
      _
    $region29: #{forward.4} parent=1 // pred_check_branch
      %48 = sbr.rel (0) target = $region31
    $region30: #{forward.4} parent=1 // pred_region
      %s49 = sadd.s32 0, 1
      %s50 = smul.u32 %s49, 5
      %s51 = smul.addr %s50, 4
      %s52 = scalar_lea.vmem %s1, %s51
      // Predicated region
      $region32: #{forward.4} parent=30 // pred_check
        _
      $region33: #{forward.4} parent=30 // pred_check_branch
        %54 = sbr.rel (0) target = $region35
      $region34: #{forward.4} parent=30 // pred_region
        // Predicated region
        $region36: #{forward.4} parent=34 // pred_check
          _
        $region37: #{forward.4} parent=34 // pred_check_branch
          %56 = sbr.rel target = $region39
        $region38: #{forward.4} parent=34 // pred_region
          // Predicated region
          $region51: #{forward.4} parent=38 // pred_check
            _
          $region52: #{forward.4} parent=38 // pred_check_branch
            %73 = sbr.rel (0) target = $region54
          $region53: #{forward.4} parent=38 // pred_region
            loop: start=0, step=1, limit=1
            $region55: #{forward.4} parent=53 // loop_pre_header
              _
            $region56: #{forward.4} parent=53 // loop_header
              %s75 = sphi 0, %s79
              %p76 = scmp.ge.s32.totalorder %s75, 1
              %s80 = sphi %s52, %s52
              %s81 = sphi [#allocation3], [#allocation3]
            $region57: #{forward.4} parent=53 // loop_header_branch
              %78 = sbr.rel (%p76) target = $region61
            $region58: #{forward.4} parent=53 // loop_body
              _
            $region59: #{forward.4} parent=53 // loop_footer
              %s79 = sadd.s32 1, %s75
            $region60: #{forward.4} parent=53 // loop_footer_branch
              %74 = sbr.rel target = $region56
            $region61: #{forward.4} parent=53 // loop_exit
              _
            loop: start=0, step=1, limit=1
            $region62: #{forward.4} parent=53 // loop_pre_header
              _
            $region63: #{forward.4} parent=53 // loop_header
              %s84 = sphi 0, %s88
              %p85 = scmp.ge.s32.totalorder %s84, 1
              %s89 = sphi %s52, %s52
              %s90 = sphi [#allocation3], [#allocation3]
            $region64: #{forward.4} parent=53 // loop_header_branch
              %87 = sbr.rel (%p85) target = $region68
            $region65: #{forward.4} parent=53 // loop_body
              %v91 = vld [vmem:[%s89] sm:$0xf]
              %92 = vst [vmem:[%s90] sm:$0xf] %v91
              %v93 = vld [vmem:[%s89 + $0x18] sm:$0xf]
              %94 = vst [vmem:[%s90 + $0x4] sm:$0xf] %v93
            $region66: #{forward.4} parent=53 // loop_footer
              %s88 = sadd.s32 1, %s84
            $region67: #{forward.4} parent=53 // loop_footer_branch
              %83 = sbr.rel target = $region63
            $region68: #{forward.4} parent=53 // loop_exit
              _
          $region54: #{forward.4} parent=38 // pred_fallthru
            _
        $region39: #{forward.4} parent=34 // pred_fallthru
          _
        // Predicated region
        $region40: #{forward.4} parent=34 // pred_check
          _
        $region41: #{forward.4} parent=34 // pred_check_branch
          %58 = sbr.rel (0) target = $region43
        $region42: #{forward.4} parent=34 // pred_region
          loop: start=0, step=1, limit=1
          $region44: #{forward.4} parent=42 // loop_pre_header
            _
          $region45: #{forward.4} parent=42 // loop_header
            %s61 = sphi 0, %s65
            %p62 = scmp.ge.s32.totalorder %s61, 1
            %s66 = sphi %s52, %s52
            %s67 = sphi [#allocation3], [#allocation3]
          $region46: #{forward.4} parent=42 // loop_header_branch
            %64 = sbr.rel (%p62) target = $region50
          $region47: #{forward.4} parent=42 // loop_body
            %v68 = vld [vmem:[%s66] sm:$0xf]
            %69 = vst [vmem:[%s67] sm:$0xf] %v68
            %v70 = vld [vmem:[%s66 + $0x18] sm:$0xf]
            %71 = vst [vmem:[%s67 + $0x4] sm:$0xf] %v70
          $region48: #{forward.4} parent=42 // loop_footer
            %s65 = sadd.s32 1, %s61
          $region49: #{forward.4} parent=42 // loop_footer_branch
            %60 = sbr.rel target = $region45
          $region50: #{forward.4} parent=42 // loop_exit
            _
        $region43: #{forward.4} parent=34 // pred_fallthru
          _
      $region35: #{forward.4} parent=30 // pred_fallthru
        _
      %95 = vnop
    $region31: #{forward.4} parent=1 // pred_fallthru
      _
    // Predicated region
    $region69: #{forward.4} parent=1 // pred_check
      _
    $region70: #{forward.4} parent=1 // pred_check_branch
      %97 = sbr.rel (0) target = $region72
    $region71: #{forward.4} parent=1 // pred_region
      _
    $region72: #{forward.4} parent=1 // pred_fallthru
      _
    // Predicated region
    $region73: #{forward.4} parent=1 // pred_check
      _
    $region74: #{forward.4} parent=1 // pred_check_branch
      %99 = sbr.rel (0) target = $region76
    $region75: #{forward.4} parent=1 // pred_region
      _
    $region76: #{forward.4} parent=1 // pred_fallthru
      _
    // Predicated region
    $region77: #{forward.4} parent=1 // pred_check
      _
    $region78: #{forward.4} parent=1 // pred_check_branch
      %101 = sbr.rel (0) target = $region80
    $region79: #{forward.4} parent=1 // pred_region
      _
    $region80: #{forward.4} parent=1 // pred_fallthru
      _
    // Predicated region
    $region81: #{forward.4} parent=1 // pred_check
      _
    $region82: #{forward.4} parent=1 // pred_check_branch
      %103 = sbr.rel (0) target = $region84
    $region83: #{forward.4} parent=1 // pred_region
      _
    $region84: #{forward.4} parent=1 // pred_fallthru
      _
    %s104 = sadd.s32 0, 1
    %s105 = smul.u32 %s104, 5
    %v107 = vld [vmem:[#allocation2] sm:$0xff]
    %v108 = vld [vmem:[#allocation2 + $0x8] sm:$0xff]
    %v109 = vld [vmem:[#allocation2 + $0x10] sm:$0xf]
    %v110 = vld [vmem:[#allocation2 + $0x14] sm:$0xff]
    %v111 = vld [vmem:[#allocation2 + $0x1c] sm:$0xff]
    %v112 = vld [vmem:[#allocation2 + $0x24] sm:$0xf]
    %v113 = vld [vmem:[#allocation3] sm:$0xf]
    %v114 = vld [vmem:[#allocation3 + $0x4] sm:$0xf]
    %v121 = vunpack.c.l.b16 %v107
    %v122 = vunpack.c.h.b16 %v107
    %v123 = vunpack.c.l.b16 %v108
    %v124 = vunpack.c.h.b16 %v108
    %v125 = vunpack.c.l.b16 %v109
    %v126 = vunpack.c.l.b16 %v110
    %v127 = vunpack.c.h.b16 %v110
    %v128 = vunpack.c.l.b16 %v111
    %v129 = vunpack.c.h.b16 %v111
    %v130 = vunpack.c.l.b16 %v112
    %v131 = vpack.c.b16 %v126, %v121
    %v132 = vpack.c.b16 %v127, %v122
    %v133 = vpack.c.b16 %v128, %v123
    %v134 = vpack.c.b16 %v129, %v124
    %v135 = vpack.c.b16 %v130, %v125
    %v143 = vunpack.c.l.b16 %v113
    %v144 = vunpack.c.l.b16 %v114
    %v145 = vpack.c.b16 %v144, %v143
    %146 = vrot.lane.b32.xlu0 %v131, 127
    %v147 = vpop.permute.xlu0 %146
    %148 = vrot.lane.b32.xlu0 %v132, 127
    %v149 = vpop.permute.xlu0 %148
    %150 = vrot.lane.b32.xlu0 %v133, 127
    %v151 = vpop.permute.xlu0 %150
    %152 = vrot.lane.b32.xlu0 %v134, 127
    %v153 = vpop.permute.xlu0 %152
    %154 = vrot.lane.b32.xlu0 %v135, 127
    %v155 = vpop.permute.xlu0 %154
    %156 = vrot.lane.b32.xlu0 %v145, 127
    %v157 = vpop.permute.xlu0 %156
    %vm158 = vcmask 1039360
    %v159 = vsel %vm158, %v147, %v149
    %v160 = vsel %vm158, %v149, %v151
    %v161 = vsel %vm158, %v151, %v153
    %v162 = vsel %vm158, %v153, %v155
    %v163 = vsel %vm158, %v155, %v157
    %169 = vrot.lane.b32.xlu0 %v131, 111
    %v170 = vpop.permute.xlu0 %169
    %171 = vrot.lane.b32.xlu0 %v132, 111
    %v172 = vpop.permute.xlu0 %171
    %173 = vrot.lane.b32.xlu0 %v133, 111
    %v174 = vpop.permute.xlu0 %173
    %175 = vrot.lane.b32.xlu0 %v134, 111
    %v176 = vpop.permute.xlu0 %175
    %177 = vrot.lane.b32.xlu0 %v135, 111
    %v178 = vpop.permute.xlu0 %177
    %179 = vrot.lane.b32.xlu0 %v145, 111
    %v180 = vpop.permute.xlu0 %179
    %vm181 = vcmask 908288
    %v182 = vsel %vm181, %v170, %v172
    %v183 = vsel %vm181, %v172, %v174
    %v184 = vsel %vm181, %v174, %v176
    %v185 = vsel %vm181, %v176, %v178
    %v186 = vsel %vm181, %v178, %v180
    %192 = vrot.lane.b32.xlu0 %v131, 110
    %v193 = vpop.permute.xlu0 %192
    %194 = vrot.lane.b32.xlu0 %v132, 110
    %v195 = vpop.permute.xlu0 %194
    %196 = vrot.lane.b32.xlu0 %v133, 110
    %v197 = vpop.permute.xlu0 %196
    %198 = vrot.lane.b32.xlu0 %v134, 110
    %v199 = vpop.permute.xlu0 %198
    %200 = vrot.lane.b32.xlu0 %v135, 110
    %v201 = vpop.permute.xlu0 %200
    %202 = vrot.lane.b32.xlu0 %v145, 110
    %v203 = vpop.permute.xlu0 %202
    %vm204 = vcmask 900096
    %v205 = vsel %vm204, %v193, %v195
    %v206 = vsel %vm204, %v195, %v197
    %v207 = vsel %vm204, %v197, %v199
    %v208 = vsel %vm204, %v199, %v201
    %v209 = vsel %vm204, %v201, %v203
    %v215 = vld [vmem:[%s2] sm:$0x3]
    %v216 = vld [vmem:[%s3] sm:$0xf]
    %218 = vset.pattern.permute.xlu0 0
    %219 = vperm.xlu0 %218, %v216
    %v220 = vpop.permute.xlu0 %219
    %vm222 = vcmask 523264
    %v224 = vsel %vm222, %v215, 0
    %226 = vmatprep.subr.bf16.mxu0 %v132
    %227 = vmatpush1.bf16.msra.mxu0 %v131
    %228 = vmatprep.subr.bf16.mxu0 %v160
    %229 = vmatpush1.bf16.msra.mxu0 %v159
    %230 = vmatprep.subr.bf16.mxu0 %v183
    %231 = vmatpush1.bf16.msra.mxu0 %v182
    %232 = vmatprep.subr.bf16.mxu0 %v206
    %233 = vmatpush1.bf16.msra.mxu0 %v205
    %234 = vmatprep.subr.bf16.mxu0 0
    %235 = vmatpush1.bf16.msra.mxu0 0
    %236 = vmatprep.subr.bf16.mxu0 0
    %237 = vmatpush1.bf16.msra.mxu0 0
    %238 = vmatprep.subr.bf16.mxu0 0
    %239 = vmatpush1.bf16.msra.mxu0 0
    %240 = vmatprep.subr.bf16.mxu0 0
    %241 = vmatpush1.bf16.msra.mxu0 0
    %242 = vmatprep.subr.bf16.mxu0 0
    %243 = vmatpush1.bf16.msra.mxu0 0
    %244 = vmatprep.subr.bf16.mxu0 0
    %245 = vmatpush1.bf16.msra.mxu0 0
    %246 = vmatprep.subr.bf16.mxu0 0
    %247 = vmatpush1.bf16.msra.mxu0 0
    %248 = vmatprep.subr.bf16.mxu0 0
    %249 = vmatpush1.bf16.msra.mxu0 0
    %250 = vmatprep.subr.bf16.mxu0 0
    %251 = vmatpush1.bf16.msra.mxu0 0
    %252 = vmatprep.subr.bf16.mxu0 0
    %253 = vmatpush1.bf16.msra.mxu0 0
    %254 = vmatprep.subr.bf16.mxu0 0
    %255 = vmatpush1.bf16.msra.mxu0 0
    %256 = vmatprep.subr.bf16.mxu0 0
    %257 = vmatpush1.bf16.msra.mxu0 0
    %258 = vmatprep.mubr.bf16.mxu0 0
    %259 = vmatmul.mubr.bf16.gmra.mrb[0].mxu0 %v224
    %v260 = vpop.f32.mrb[0].mxu0
    %v261 = vadd.f32 %v220, %v260
    %v262 = vpop.f32.mrb[0].mxu0
    %v263 = vadd.f32 %v220, %v262
    %v264 = vpop.f32.mrb[0].mxu0
    %v265 = vpop.f32.mrb[0].mxu0
    %266 = vdwg.mxu0
    %267 = vmatprep.subr.bf16.mxu0 %v134
    %268 = vmatpush1.bf16.msra.mxu0 %v133
    %269 = vmatprep.subr.bf16.mxu0 %v162
    %270 = vmatpush1.bf16.msra.mxu0 %v161
    %271 = vmatprep.subr.bf16.mxu0 %v185
    %272 = vmatpush1.bf16.msra.mxu0 %v184
    %273 = vmatprep.subr.bf16.mxu0 %v208
    %274 = vmatpush1.bf16.msra.mxu0 %v207
    %275 = vmatprep.subr.bf16.mxu0 0
    %276 = vmatpush1.bf16.msra.mxu0 0
    %277 = vmatprep.subr.bf16.mxu0 0
    %278 = vmatpush1.bf16.msra.mxu0 0
    %279 = vmatprep.subr.bf16.mxu0 0
    %280 = vmatpush1.bf16.msra.mxu0 0
    %281 = vmatprep.subr.bf16.mxu0 0
    %282 = vmatpush1.bf16.msra.mxu0 0
    %283 = vmatprep.subr.bf16.mxu0 0
    %284 = vmatpush1.bf16.msra.mxu0 0
    %285 = vmatprep.subr.bf16.mxu0 0
    %286 = vmatpush1.bf16.msra.mxu0 0
    %287 = vmatprep.subr.bf16.mxu0 0
    %288 = vmatpush1.bf16.msra.mxu0 0
    %289 = vmatprep.subr.bf16.mxu0 0
    %290 = vmatpush1.bf16.msra.mxu0 0
    %291 = vmatprep.subr.bf16.mxu0 0
    %292 = vmatpush1.bf16.msra.mxu0 0
    %293 = vmatprep.subr.bf16.mxu0 0
    %294 = vmatpush1.bf16.msra.mxu0 0
    %295 = vmatprep.subr.bf16.mxu0 0
    %296 = vmatpush1.bf16.msra.mxu0 0
    %297 = vmatprep.subr.bf16.mxu0 0
    %298 = vmatpush1.bf16.msra.mxu0 0
    %299 = vmatprep.mubr.bf16.mxu0 0
    %300 = vmatmul.mubr.bf16.gmra.mrb[0].mxu0 %v224
    %v301 = vpop.f32.mrb[0].mxu0
    %v302 = vadd.f32 %v220, %v301
    %v303 = vpop.f32.mrb[0].mxu0
    %v304 = vadd.f32 %v220, %v303
    %v305 = vpop.f32.mrb[0].mxu0
    %v306 = vpop.f32.mrb[0].mxu0
    %307 = vdwg.mxu0
    %308 = vmatprep.subr.bf16.mxu0 0
    %309 = vmatpush1.bf16.msra.mxu0 %v135
    %310 = vmatprep.subr.bf16.mxu0 0
    %311 = vmatpush1.bf16.msra.mxu0 %v163
    %312 = vmatprep.subr.bf16.mxu0 0
    %313 = vmatpush1.bf16.msra.mxu0 %v186
    %314 = vmatprep.subr.bf16.mxu0 0
    %315 = vmatpush1.bf16.msra.mxu0 %v209
    %316 = vmatprep.subr.bf16.mxu0 0
    %317 = vmatpush1.bf16.msra.mxu0 0
    %318 = vmatprep.subr.bf16.mxu0 0
    %319 = vmatpush1.bf16.msra.mxu0 0
    %320 = vmatprep.subr.bf16.mxu0 0
    %321 = vmatpush1.bf16.msra.mxu0 0
    %322 = vmatprep.subr.bf16.mxu0 0
    %323 = vmatpush1.bf16.msra.mxu0 0
    %324 = vmatprep.subr.bf16.mxu0 0
    %325 = vmatpush1.bf16.msra.mxu0 0
    %326 = vmatprep.subr.bf16.mxu0 0
    %327 = vmatpush1.bf16.msra.mxu0 0
    %328 = vmatprep.subr.bf16.mxu0 0
    %329 = vmatpush1.bf16.msra.mxu0 0
    %330 = vmatprep.subr.bf16.mxu0 0
    %331 = vmatpush1.bf16.msra.mxu0 0
    %332 = vmatprep.subr.bf16.mxu0 0
    %333 = vmatpush1.bf16.msra.mxu0 0
    %334 = vmatprep.subr.bf16.mxu0 0
    %335 = vmatpush1.bf16.msra.mxu0 0
    %336 = vmatprep.subr.bf16.mxu0 0
    %337 = vmatpush1.bf16.msra.mxu0 0
    %338 = vmatprep.subr.bf16.mxu0 0
    %339 = vmatpush1.bf16.msra.mxu0 0
    %340 = vmatprep.mubr.bf16.mxu0 0
    %341 = vmatmul.mubr.bf16.gmra.mrb[0].mxu0 %v224
    %v342 = vpop.f32.mrb[0].mxu0
    %v343 = vadd.f32 %v220, %v342
    %v344 = vpop.f32.mrb[0].mxu0
    %v345 = vpop.f32.mrb[0].mxu0
    %v346 = vpop.f32.mrb[0].mxu0
    %347 = vdwg.mxu0
    %vm348 = vcmp.ge.f32.partialorder %v261, 0.0
    %vm349 = vcmp.ge.f32.partialorder %v263, 0.0
    %vm350 = vcmp.ge.f32.partialorder %v302, 0.0
    %vm351 = vcmp.ge.f32.partialorder %v304, 0.0
    %vm352 = vcmp.ge.f32.partialorder %v343, 0.0
    %v353 = vmul.f32 %v261, 0.2
    %v354 = vmul.f32 %v263, 0.2
    %v355 = vmul.f32 %v302, 0.2
    %v356 = vmul.f32 %v304, 0.2
    %v357 = vmul.f32 %v343, 0.2
    %v358 = vsel %vm348, %v261, %v353
    %v359 = vsel %vm349, %v263, %v354
    %v360 = vsel %vm350, %v302, %v355
    %v361 = vsel %vm351, %v304, %v356
    %v362 = vsel %vm352, %v343, %v357
    %v363 = vpack.c.bf16 %v358, %v358
    %v364 = vpack.c.bf16 %v359, %v359
    %v365 = vpack.c.bf16 %v360, %v360
    %v366 = vpack.c.bf16 %v361, %v361
    %v367 = vpack.c.bf16 %v362, %v362
    %v373 = vcombine.low %v363, %v364
    %v374 = vcombine.low %v365, %v366
    %v376 = vunpack.c.l.s4 1983009808
    %v377 = vunpack.c.0.s8 %v376
    %v378 = vlaneseq
    %v379 = vshrl.u32 %v378, 7
    %v380 = vsub.s32 %v377, %v379
    %v381 = vrot.slane %v373, %v380
    %v383 = vunpack.c.l.s4 1983009808
    %v384 = vunpack.c.0.s8 %v383
    %v385 = vlaneseq
    %v386 = vshrl.u32 %v385, 7
    %v387 = vsub.s32 %v384, %v386
    %v388 = vrot.slane %v374, %v387
    %v389 = vcombine.low %v381, %v388
    %v391 = vunpack.c.l.s4 1983009808
    %v392 = vunpack.c.0.s8 %v391
    %v393 = vlaneseq
    %v394 = vshrl.u32 %v393, 7
    %v395 = vsub.s32 %v392, %v394
    %v396 = vrot.slane %v367, %v395
    %399 = vst [vmem:[%s4] sm:$0xff] %v389
    %400 = vst [vmem:[%s4 + $0x8] sm:$0x3] %v396
    // Predicated region
    $region85: #{forward.4} parent=1 // pred_check
      _
    $region86: #{forward.4} parent=1 // pred_check_branch
      %402 = sbr.rel (0) target = $region88
    $region87: #{forward.4} parent=1 // pred_region
      _
    $region88: #{forward.4} parent=1 // pred_fallthru
      _
    // Predicated region
    $region89: #{forward.4} parent=1 // pred_check
      _
    $region90: #{forward.4} parent=1 // pred_check_branch
      %404 = sbr.rel (0) target = $region92
    $region91: #{forward.4} parent=1 // pred_region
      _
    $region92: #{forward.4} parent=1 // pred_fallthru
      _

// kernel: forward.5
$region0: #{forward.5}
  #allocation0 [shape = 'u32[]', space=smem, size = 0x4, offset = 0x4, fixed_abs, tag = 'smem constant byte address 0x4 - core index']
  #allocation1 [shape = 'u32[144,128]{1,0:T(1,128)}', space=vmem, size = 0x12000, scoped, tag = 'internal scratch']
  %s0 = inlined_call_operand.vmem [shape: bf16[16,384], index: 0, kind: input, shape index: {}, may-alias: {0,1}]
  %s1 = inlined_call_operand.vmem [shape: bf16[16,384], index: 1, kind: input, shape index: {}, may-alias: {0,1}]
  %s2 = inlined_call_operand.vmem [shape: bf16[8,64], index: 2, kind: input, shape index: {}]
  %s3 = inlined_call_operand.vmem [shape: f32[8,1], index: 3, kind: input, shape index: {}]
  %s4 = inlined_call_operand.vmem [shape: bf16[8,256], index: 4, kind: output, shape index: {}]
  %s5 = sld [smem:[#allocation0]]
  $region105: #{forward.5} parent=0
    _
  %s7 = ssub.s32 1, %s5
  %s8 = scalar_select 0, %s7, %s5
  $region1: #{forward.5} parent=0
    #allocation2 [shape = 'u8[8192]{0}', space=vmem, size = 0x2000, scoped, tag = 'input window, operand 0, single buffered']
    #allocation3 [shape = 'u8[4096]{0}', space=vmem, size = 0x1000, scoped, tag = 'input window, operand 1, single buffered']
    // Predicated region
    $region2: #{forward.5} parent=1 // pred_check
      _
    $region3: #{forward.5} parent=1 // pred_check_branch
      %10 = sbr.rel (0) target = $region5
    $region4: #{forward.5} parent=1 // pred_region
      // Predicated region
      $region6: #{forward.5} parent=4 // pred_check
        _
      $region7: #{forward.5} parent=4 // pred_check_branch
        %12 = sbr.rel (0) target = $region9
      $region8: #{forward.5} parent=4 // pred_region
        // Predicated region
        $region10: #{forward.5} parent=8 // pred_check
          _
        $region11: #{forward.5} parent=8 // pred_check_branch
          %14 = sbr.rel (0) target = $region13
        $region12: #{forward.5} parent=8 // pred_region
          // Predicated region
          $region25: #{forward.5} parent=12 // pred_check
            _
          $region26: #{forward.5} parent=12 // pred_check_branch
            %31 = sbr.rel (0) target = $region28
          $region27: #{forward.5} parent=12 // pred_region
            loop: start=0, step=1, limit=1
            $region29: #{forward.5} parent=27 // loop_pre_header
              _
            $region30: #{forward.5} parent=27 // loop_header
              %s33 = sphi 0, %s37
              %p34 = scmp.ge.s32.totalorder %s33, 1
              %s38 = sphi %s0, %s0
              %s39 = sphi [#allocation2], [#allocation2]
            $region31: #{forward.5} parent=27 // loop_header_branch
              %36 = sbr.rel (%p34) target = $region35
            $region32: #{forward.5} parent=27 // loop_body
              %v40 = vld [vmem:[%s38] sm:$0xff]
              %41 = vst [vmem:[%s39] sm:$0xff] %v40
              %v42 = vld [vmem:[%s38 + $0xc] sm:$0xff]
              %43 = vst [vmem:[%s39 + $0x8] sm:$0xff] %v42
            $region33: #{forward.5} parent=27 // loop_footer
              %s37 = sadd.s32 1, %s33
            $region34: #{forward.5} parent=27 // loop_footer_branch
              %32 = sbr.rel target = $region30
            $region35: #{forward.5} parent=27 // loop_exit
              _
          $region28: #{forward.5} parent=12 // pred_fallthru
            _
          // Predicated region
          $region36: #{forward.5} parent=12 // pred_check
            _
          $region37: #{forward.5} parent=12 // pred_check_branch
            %45 = sbr.rel target = $region39
          $region38: #{forward.5} parent=12 // pred_region
            _
          $region39: #{forward.5} parent=12 // pred_fallthru
            _
        $region13: #{forward.5} parent=8 // pred_fallthru
          _
        // Predicated region
        $region14: #{forward.5} parent=8 // pred_check
          _
        $region15: #{forward.5} parent=8 // pred_check_branch
          %16 = sbr.rel target = $region17
        $region16: #{forward.5} parent=8 // pred_region
          loop: start=0, step=1, limit=1
          $region18: #{forward.5} parent=16 // loop_pre_header
            _
          $region19: #{forward.5} parent=16 // loop_header
            %s19 = sphi 0, %s23
            %p20 = scmp.ge.s32.totalorder %s19, 1
            %s24 = sphi %s0, %s0
            %s25 = sphi [#allocation2], [#allocation2]
          $region20: #{forward.5} parent=16 // loop_header_branch
            %22 = sbr.rel (%p20) target = $region24
          $region21: #{forward.5} parent=16 // loop_body
            %v26 = vld [vmem:[%s24] sm:$0xff]
            %27 = vst [vmem:[%s25] sm:$0xff] %v26
            %v28 = vld [vmem:[%s24 + $0xc] sm:$0xff]
            %29 = vst [vmem:[%s25 + $0x8] sm:$0xff] %v28
          $region22: #{forward.5} parent=16 // loop_footer
            %s23 = sadd.s32 1, %s19
          $region23: #{forward.5} parent=16 // loop_footer_branch
            %18 = sbr.rel target = $region19
          $region24: #{forward.5} parent=16 // loop_exit
            _
        $region17: #{forward.5} parent=8 // pred_fallthru
          _
      $region9: #{forward.5} parent=4 // pred_fallthru
        _
      %46 = vnop
    $region5: #{forward.5} parent=1 // pred_fallthru
      _
    // Predicated region
    $region40: #{forward.5} parent=1 // pred_check
      _
    $region41: #{forward.5} parent=1 // pred_check_branch
      %48 = sbr.rel (0) target = $region43
    $region42: #{forward.5} parent=1 // pred_region
      %s49 = sadd.s32 0, 1
      %s50 = smul.u32 %s49, 2
      %s51 = smul.addr %s50, 4
      %s52 = scalar_lea.vmem %s1, %s51
      // Predicated region
      $region44: #{forward.5} parent=42 // pred_check
        _
      $region45: #{forward.5} parent=42 // pred_check_branch
        %54 = sbr.rel (0) target = $region47
      $region46: #{forward.5} parent=42 // pred_region
        // Predicated region
        $region48: #{forward.5} parent=46 // pred_check
          _
        $region49: #{forward.5} parent=46 // pred_check_branch
          %56 = sbr.rel target = $region51
        $region50: #{forward.5} parent=46 // pred_region
          // Predicated region
          $region63: #{forward.5} parent=50 // pred_check
            _
          $region64: #{forward.5} parent=50 // pred_check_branch
            %73 = sbr.rel (0) target = $region66
          $region65: #{forward.5} parent=50 // pred_region
            loop: start=0, step=1, limit=1
            $region67: #{forward.5} parent=65 // loop_pre_header
              _
            $region68: #{forward.5} parent=65 // loop_header
              %s75 = sphi 0, %s79
              %p76 = scmp.ge.s32.totalorder %s75, 1
              %s80 = sphi %s52, %s52
              %s81 = sphi [#allocation3], [#allocation3]
            $region69: #{forward.5} parent=65 // loop_header_branch
              %78 = sbr.rel (%p76) target = $region73
            $region70: #{forward.5} parent=65 // loop_body
              _
            $region71: #{forward.5} parent=65 // loop_footer
              %s79 = sadd.s32 1, %s75
            $region72: #{forward.5} parent=65 // loop_footer_branch
              %74 = sbr.rel target = $region68
            $region73: #{forward.5} parent=65 // loop_exit
              _
            loop: start=0, step=1, limit=1
            $region74: #{forward.5} parent=65 // loop_pre_header
              _
            $region75: #{forward.5} parent=65 // loop_header
              %s84 = sphi 0, %s88
              %p85 = scmp.ge.s32.totalorder %s84, 1
              %s89 = sphi %s52, %s52
              %s90 = sphi [#allocation3], [#allocation3]
            $region76: #{forward.5} parent=65 // loop_header_branch
              %87 = sbr.rel (%p85) target = $region80
            $region77: #{forward.5} parent=65 // loop_body
              %v91 = vld [vmem:[%s89] sm:$0xf]
              %92 = vst [vmem:[%s90] sm:$0xf] %v91
              %v93 = vld [vmem:[%s89 + $0xc] sm:$0xf]
              %94 = vst [vmem:[%s90 + $0x4] sm:$0xf] %v93
            $region78: #{forward.5} parent=65 // loop_footer
              %s88 = sadd.s32 1, %s84
            $region79: #{forward.5} parent=65 // loop_footer_branch
              %83 = sbr.rel target = $region75
            $region80: #{forward.5} parent=65 // loop_exit
              _
          $region66: #{forward.5} parent=50 // pred_fallthru
            _
        $region51: #{forward.5} parent=46 // pred_fallthru
          _
        // Predicated region
        $region52: #{forward.5} parent=46 // pred_check
          _
        $region53: #{forward.5} parent=46 // pred_check_branch
          %58 = sbr.rel (0) target = $region55
        $region54: #{forward.5} parent=46 // pred_region
          loop: start=0, step=1, limit=1
          $region56: #{forward.5} parent=54 // loop_pre_header
            _
          $region57: #{forward.5} parent=54 // loop_header
            %s61 = sphi 0, %s65
            %p62 = scmp.ge.s32.totalorder %s61, 1
            %s66 = sphi %s52, %s52
            %s67 = sphi [#allocation3], [#allocation3]
          $region58: #{forward.5} parent=54 // loop_header_branch
            %64 = sbr.rel (%p62) target = $region62
          $region59: #{forward.5} parent=54 // loop_body
            %v68 = vld [vmem:[%s66] sm:$0xf]
            %69 = vst [vmem:[%s67] sm:$0xf] %v68
            %v70 = vld [vmem:[%s66 + $0xc] sm:$0xf]
            %71 = vst [vmem:[%s67 + $0x4] sm:$0xf] %v70
          $region60: #{forward.5} parent=54 // loop_footer
            %s65 = sadd.s32 1, %s61
          $region61: #{forward.5} parent=54 // loop_footer_branch
            %60 = sbr.rel target = $region57
          $region62: #{forward.5} parent=54 // loop_exit
            _
        $region55: #{forward.5} parent=46 // pred_fallthru
          _
      $region47: #{forward.5} parent=42 // pred_fallthru
        _
      %95 = vnop
    $region43: #{forward.5} parent=1 // pred_fallthru
      _
    // Predicated region
    $region81: #{forward.5} parent=1 // pred_check
      _
    $region82: #{forward.5} parent=1 // pred_check_branch
      %97 = sbr.rel (0) target = $region84
    $region83: #{forward.5} parent=1 // pred_region
      _
    $region84: #{forward.5} parent=1 // pred_fallthru
      _
    // Predicated region
    $region85: #{forward.5} parent=1 // pred_check
      _
    $region86: #{forward.5} parent=1 // pred_check_branch
      %99 = sbr.rel (0) target = $region88
    $region87: #{forward.5} parent=1 // pred_region
      _
    $region88: #{forward.5} parent=1 // pred_fallthru
      _
    // Predicated region
    $region89: #{forward.5} parent=1 // pred_check
      _
    $region90: #{forward.5} parent=1 // pred_check_branch
      %101 = sbr.rel (0) target = $region92
    $region91: #{forward.5} parent=1 // pred_region
      _
    $region92: #{forward.5} parent=1 // pred_fallthru
      _
    // Predicated region
    $region93: #{forward.5} parent=1 // pred_check
      _
    $region94: #{forward.5} parent=1 // pred_check_branch
      %103 = sbr.rel (0) target = $region96
    $region95: #{forward.5} parent=1 // pred_region
      _
    $region96: #{forward.5} parent=1 // pred_fallthru
      _
    %s104 = sadd.s32 0, 1
    %s105 = smul.u32 %s104, 2
    %v107 = vld [vmem:[#allocation2] sm:$0xff]
    %v108 = vld [vmem:[#allocation2 + $0x8] sm:$0xff]
    %v109 = vld [vmem:[#allocation3] sm:$0xf]
    %v110 = vld [vmem:[#allocation3 + $0x4] sm:$0xf]
    %v113 = vunpack.c.l.b16 %v107
    %v114 = vunpack.c.h.b16 %v107
    %v115 = vunpack.c.l.b16 %v108
    %v116 = vunpack.c.h.b16 %v108
    %v117 = vpack.c.b16 %v115, %v113
    %v118 = vpack.c.b16 %v116, %v114
    %v123 = vunpack.c.l.b16 %v109
    %v124 = vunpack.c.l.b16 %v110
    %v125 = vpack.c.b16 %v124, %v123
    %126 = vrot.lane.b32.xlu0 %v117, 127
    %v127 = vpop.permute.xlu0 %126
    %128 = vrot.lane.b32.xlu0 %v118, 127
    %v129 = vpop.permute.xlu0 %128
    %130 = vrot.lane.b32.xlu0 %v125, 127
    %v131 = vpop.permute.xlu0 %130
    %vm132 = vcmask 1039360
    %v133 = vsel %vm132, %v127, %v129
    %v134 = vsel %vm132, %v129, %v131
    %137 = vrot.lane.b32.xlu0 %v117, 119
    %v138 = vpop.permute.xlu0 %137
    %139 = vrot.lane.b32.xlu0 %v118, 119
    %v140 = vpop.permute.xlu0 %139
    %141 = vrot.lane.b32.xlu0 %v125, 119
    %v142 = vpop.permute.xlu0 %141
    %vm143 = vcmask 973824
    %v144 = vsel %vm143, %v138, %v140
    %v145 = vsel %vm143, %v140, %v142
    %148 = vrot.lane.b32.xlu0 %v117, 118
    %v149 = vpop.permute.xlu0 %148
    %150 = vrot.lane.b32.xlu0 %v118, 118
    %v151 = vpop.permute.xlu0 %150
    %152 = vrot.lane.b32.xlu0 %v125, 118
    %v153 = vpop.permute.xlu0 %152
    %vm154 = vcmask 965632
    %v155 = vsel %vm154, %v149, %v151
    %v156 = vsel %vm154, %v151, %v153
    %v159 = vld [vmem:[%s2] sm:$0xf]
    %v160 = vld [vmem:[%s3] sm:$0xff]
    %162 = vset.pattern.permute.xlu0 0
    %163 = vperm.xlu0 %162, %v160
    %v164 = vpop.permute.xlu0 %163
    %vm166 = vcmask 523264
    %v168 = vsel %vm166, %v159, 0
    %170 = vmatprep.subr.bf16.mxu0 %v118
    %171 = vmatpush1.bf16.msra.mxu0 %v117
    %172 = vmatprep.subr.bf16.mxu0 %v134
    %173 = vmatpush1.bf16.msra.mxu0 %v133
    %174 = vmatprep.subr.bf16.mxu0 %v145
    %175 = vmatpush1.bf16.msra.mxu0 %v144
    %176 = vmatprep.subr.bf16.mxu0 %v156
    %177 = vmatpush1.bf16.msra.mxu0 %v155
    %178 = vmatprep.subr.bf16.mxu0 0
    %179 = vmatpush1.bf16.msra.mxu0 0
    %180 = vmatprep.subr.bf16.mxu0 0
    %181 = vmatpush1.bf16.msra.mxu0 0
    %182 = vmatprep.subr.bf16.mxu0 0
    %183 = vmatpush1.bf16.msra.mxu0 0
    %184 = vmatprep.subr.bf16.mxu0 0
    %185 = vmatpush1.bf16.msra.mxu0 0
    %186 = vmatprep.subr.bf16.mxu0 0
    %187 = vmatpush1.bf16.msra.mxu0 0
    %188 = vmatprep.subr.bf16.mxu0 0
    %189 = vmatpush1.bf16.msra.mxu0 0
    %190 = vmatprep.subr.bf16.mxu0 0
    %191 = vmatpush1.bf16.msra.mxu0 0
    %192 = vmatprep.subr.bf16.mxu0 0
    %193 = vmatpush1.bf16.msra.mxu0 0
    %194 = vmatprep.subr.bf16.mxu0 0
    %195 = vmatpush1.bf16.msra.mxu0 0
    %196 = vmatprep.subr.bf16.mxu0 0
    %197 = vmatpush1.bf16.msra.mxu0 0
    %198 = vmatprep.subr.bf16.mxu0 0
    %199 = vmatpush1.bf16.msra.mxu0 0
    %200 = vmatprep.subr.bf16.mxu0 0
    %201 = vmatpush1.bf16.msra.mxu0 0
    %202 = vmatprep.mubr.bf16.mxu0 0
    %203 = vmatmul.mubr.bf16.gmra.mrb[0].mxu0 %v168
    %v204 = vpop.f32.mrb[0].mxu0
    %v205 = vadd.f32 %v164, %v204
    %v206 = vpop.f32.mrb[0].mxu0
    %v207 = vadd.f32 %v164, %v206
    %v208 = vpop.f32.mrb[0].mxu0
    %v209 = vpop.f32.mrb[0].mxu0
    %210 = vdwg.mxu0
    %vm211 = vcmp.ge.f32.partialorder %v205, 0.0
    %vm212 = vcmp.ge.f32.partialorder %v207, 0.0
    %v213 = vmul.f32 %v205, 0.2
    %v214 = vmul.f32 %v207, 0.2
    %v215 = vsel %vm211, %v205, %v213
    %v216 = vsel %vm212, %v207, %v214
    %v217 = vpack.c.bf16 %v215, %v215
    %v218 = vpack.c.bf16 %v216, %v216
    %v221 = vunpack.c.l.b16 %v217
    %v222 = vunpack.c.l.b16 %v218
    %v223 = vpack.c.b16 %v222, %v221
    %225 = vst [vmem:[%s4] sm:$0xff] %v223
    // Predicated region
    $region97: #{forward.5} parent=1 // pred_check
      _
    $region98: #{forward.5} parent=1 // pred_check_branch
      %227 = sbr.rel (0) target = $region100
    $region99: #{forward.5} parent=1 // pred_region
      _
    $region100: #{forward.5} parent=1 // pred_fallthru
      _
    // Predicated region
    $region101: #{forward.5} parent=1 // pred_check
      _
    $region102: #{forward.5} parent=1 // pred_check_branch
      %229 = sbr.rel (0) target = $region104
    $region103: #{forward.5} parent=1 // pred_region
      _
    $region104: #{forward.5} parent=1 // pred_fallthru
      _

// kernel: forward.6
$region0: #{forward.6}
  #allocation0 [shape = 'u32[]', space=smem, size = 0x4, offset = 0x4, fixed_abs, tag = 'smem constant byte address 0x4 - core index']
  #allocation1 [shape = 'u32[144,128]{1,0:T(1,128)}', space=vmem, size = 0x12000, scoped, tag = 'internal scratch']
  %s0 = inlined_call_operand.vmem [shape: bf16[32,256], index: 0, kind: input, shape index: {}, may-alias: {0,1}]
  %s1 = inlined_call_operand.vmem [shape: bf16[32,256], index: 1, kind: input, shape index: {}, may-alias: {0,1}]
  %s2 = inlined_call_operand.vmem [shape: bf16[16,128], index: 2, kind: input, shape index: {}]
  %s3 = inlined_call_operand.vmem [shape: f32[16,1], index: 3, kind: input, shape index: {}]
  %s4 = inlined_call_operand.vmem [shape: bf16[16,128], index: 4, kind: output, shape index: {}]
  %s5 = sld [smem:[#allocation0]]
  $region108: #{forward.6} parent=0
    _
  %s7 = ssub.s32 1, %s5
  %s8 = scalar_select 0, %s7, %s5
  $region1: #{forward.6} parent=0
    #allocation2 [shape = 'u8[8192]{0}', space=vmem, size = 0x2000, scoped, tag = 'input window, operand 0, single buffered']
    #allocation3 [shape = 'u8[8192]{0}', space=vmem, size = 0x2000, scoped, tag = 'input window, operand 1, single buffered']
    // Predicated region
    $region2: #{forward.6} parent=1 // pred_check
      _
    $region3: #{forward.6} parent=1 // pred_check_branch
      %10 = sbr.rel (0) target = $region5
    $region4: #{forward.6} parent=1 // pred_region
      // Predicated region
      $region6: #{forward.6} parent=4 // pred_check
        _
      $region7: #{forward.6} parent=4 // pred_check_branch
        %12 = sbr.rel (0) target = $region9
      $region8: #{forward.6} parent=4 // pred_region
        // Predicated region
        $region10: #{forward.6} parent=8 // pred_check
          _
        $region11: #{forward.6} parent=8 // pred_check_branch
          %14 = sbr.rel target = $region13
        $region12: #{forward.6} parent=8 // pred_region
          // Predicated region
          $region25: #{forward.6} parent=12 // pred_check
            _
          $region26: #{forward.6} parent=12 // pred_check_branch
            %35 = sbr.rel (0) target = $region28
          $region27: #{forward.6} parent=12 // pred_region
            loop: start=0, step=1, limit=1
            $region29: #{forward.6} parent=27 // loop_pre_header
              _
            $region30: #{forward.6} parent=27 // loop_header
              %s37 = sphi 0, %s41
              %p38 = scmp.ge.s32.totalorder %s37, 1
              %s42 = sphi %s0, %s0
              %s43 = sphi [#allocation2], [#allocation2]
            $region31: #{forward.6} parent=27 // loop_header_branch
              %40 = sbr.rel (%p38) target = $region35
            $region32: #{forward.6} parent=27 // loop_body
              _
            $region33: #{forward.6} parent=27 // loop_footer
              %s41 = sadd.s32 1, %s37
            $region34: #{forward.6} parent=27 // loop_footer_branch
              %36 = sbr.rel target = $region30
            $region35: #{forward.6} parent=27 // loop_exit
              _
            loop: start=0, step=1, limit=1
            $region36: #{forward.6} parent=27 // loop_pre_header
              _
            $region37: #{forward.6} parent=27 // loop_header
              %s46 = sphi 0, %s50
              %p47 = scmp.ge.s32.totalorder %s46, 1
              %s51 = sphi %s0, %s0
              %s52 = sphi [#allocation2], [#allocation2]
            $region38: #{forward.6} parent=27 // loop_header_branch
              %49 = sbr.rel (%p47) target = $region42
            $region39: #{forward.6} parent=27 // loop_body
              %v53 = vld [vmem:[%s51] sm:$0xf]
              %54 = vst [vmem:[%s52] sm:$0xf] %v53
              %v55 = vld [vmem:[%s51 + $0x8] sm:$0xf]
              %56 = vst [vmem:[%s52 + $0x4] sm:$0xf] %v55
              %v57 = vld [vmem:[%s51 + $0x10] sm:$0xf]
              %58 = vst [vmem:[%s52 + $0x8] sm:$0xf] %v57
              %v59 = vld [vmem:[%s51 + $0x18] sm:$0xf]
              %60 = vst [vmem:[%s52 + $0xc] sm:$0xf] %v59
            $region40: #{forward.6} parent=27 // loop_footer
              %s50 = sadd.s32 1, %s46
            $region41: #{forward.6} parent=27 // loop_footer_branch
              %45 = sbr.rel target = $region37
            $region42: #{forward.6} parent=27 // loop_exit
              _
          $region28: #{forward.6} parent=12 // pred_fallthru
            _
        $region13: #{forward.6} parent=8 // pred_fallthru
          _
        // Predicated region
        $region14: #{forward.6} parent=8 // pred_check
          _
        $region15: #{forward.6} parent=8 // pred_check_branch
          %16 = sbr.rel (0) target = $region17
        $region16: #{forward.6} parent=8 // pred_region
          loop: start=0, step=1, limit=1
          $region18: #{forward.6} parent=16 // loop_pre_header
            _
          $region19: #{forward.6} parent=16 // loop_header
            %s19 = sphi 0, %s23
            %p20 = scmp.ge.s32.totalorder %s19, 1
            %s24 = sphi %s0, %s0
            %s25 = sphi [#allocation2], [#allocation2]
          $region20: #{forward.6} parent=16 // loop_header_branch
            %22 = sbr.rel (%p20) target = $region24
          $region21: #{forward.6} parent=16 // loop_body
            %v26 = vld [vmem:[%s24] sm:$0xf]
            %27 = vst [vmem:[%s25] sm:$0xf] %v26
            %v28 = vld [vmem:[%s24 + $0x8] sm:$0xf]
            %29 = vst [vmem:[%s25 + $0x4] sm:$0xf] %v28
            %v30 = vld [vmem:[%s24 + $0x10] sm:$0xf]
            %31 = vst [vmem:[%s25 + $0x8] sm:$0xf] %v30
            %v32 = vld [vmem:[%s24 + $0x18] sm:$0xf]
            %33 = vst [vmem:[%s25 + $0xc] sm:$0xf] %v32
          $region22: #{forward.6} parent=16 // loop_footer
            %s23 = sadd.s32 1, %s19
          $region23: #{forward.6} parent=16 // loop_footer_branch
            %18 = sbr.rel target = $region19
          $region24: #{forward.6} parent=16 // loop_exit
            _
        $region17: #{forward.6} parent=8 // pred_fallthru
          _
      $region9: #{forward.6} parent=4 // pred_fallthru
        _
      %61 = vnop
    $region5: #{forward.6} parent=1 // pred_fallthru
      _
    // Predicated region
    $region43: #{forward.6} parent=1 // pred_check
      _
    $region44: #{forward.6} parent=1 // pred_check_branch
      %63 = sbr.rel (0) target = $region46
    $region45: #{forward.6} parent=1 // pred_region
      %s64 = sadd.s32 0, 1
      %s65 = smul.addr %s64, 4
      %s66 = scalar_lea.vmem %s1, %s65
      // Predicated region
      $region47: #{forward.6} parent=45 // pred_check
        _
      $region48: #{forward.6} parent=45 // pred_check_branch
        %68 = sbr.rel (0) target = $region50
      $region49: #{forward.6} parent=45 // pred_region
        // Predicated region
        $region51: #{forward.6} parent=49 // pred_check
          _
        $region52: #{forward.6} parent=49 // pred_check_branch
          %70 = sbr.rel target = $region54
        $region53: #{forward.6} parent=49 // pred_region
          // Predicated region
          $region66: #{forward.6} parent=53 // pred_check
            _
          $region67: #{forward.6} parent=53 // pred_check_branch
            %91 = sbr.rel (0) target = $region69
          $region68: #{forward.6} parent=53 // pred_region
            loop: start=0, step=1, limit=1
            $region70: #{forward.6} parent=68 // loop_pre_header
              _
            $region71: #{forward.6} parent=68 // loop_header
              %s93 = sphi 0, %s97
              %p94 = scmp.ge.s32.totalorder %s93, 1
              %s98 = sphi %s66, %s66
              %s99 = sphi [#allocation3], [#allocation3]
            $region72: #{forward.6} parent=68 // loop_header_branch
              %96 = sbr.rel (%p94) target = $region76
            $region73: #{forward.6} parent=68 // loop_body
              _
            $region74: #{forward.6} parent=68 // loop_footer
              %s97 = sadd.s32 1, %s93
            $region75: #{forward.6} parent=68 // loop_footer_branch
              %92 = sbr.rel target = $region71
            $region76: #{forward.6} parent=68 // loop_exit
              _
            loop: start=0, step=1, limit=1
            $region77: #{forward.6} parent=68 // loop_pre_header
              _
            $region78: #{forward.6} parent=68 // loop_header
              %s102 = sphi 0, %s106
              %p103 = scmp.ge.s32.totalorder %s102, 1
              %s107 = sphi %s66, %s66
              %s108 = sphi [#allocation3], [#allocation3]
            $region79: #{forward.6} parent=68 // loop_header_branch
              %105 = sbr.rel (%p103) target = $region83
            $region80: #{forward.6} parent=68 // loop_body
              %v109 = vld [vmem:[%s107] sm:$0xf]
              %110 = vst [vmem:[%s108] sm:$0xf] %v109
              %v111 = vld [vmem:[%s107 + $0x8] sm:$0xf]
              %112 = vst [vmem:[%s108 + $0x4] sm:$0xf] %v111
              %v113 = vld [vmem:[%s107 + $0x10] sm:$0xf]
              %114 = vst [vmem:[%s108 + $0x8] sm:$0xf] %v113
              %v115 = vld [vmem:[%s107 + $0x18] sm:$0xf]
              %116 = vst [vmem:[%s108 + $0xc] sm:$0xf] %v115
            $region81: #{forward.6} parent=68 // loop_footer
              %s106 = sadd.s32 1, %s102
            $region82: #{forward.6} parent=68 // loop_footer_branch
              %101 = sbr.rel target = $region78
            $region83: #{forward.6} parent=68 // loop_exit
              _
          $region69: #{forward.6} parent=53 // pred_fallthru
            _
        $region54: #{forward.6} parent=49 // pred_fallthru
          _
        // Predicated region
        $region55: #{forward.6} parent=49 // pred_check
          _
        $region56: #{forward.6} parent=49 // pred_check_branch
          %72 = sbr.rel (0) target = $region58
        $region57: #{forward.6} parent=49 // pred_region
          loop: start=0, step=1, limit=1
          $region59: #{forward.6} parent=57 // loop_pre_header
            _
          $region60: #{forward.6} parent=57 // loop_header
            %s75 = sphi 0, %s79
            %p76 = scmp.ge.s32.totalorder %s75, 1
            %s80 = sphi %s66, %s66
            %s81 = sphi [#allocation3], [#allocation3]
          $region61: #{forward.6} parent=57 // loop_header_branch
            %78 = sbr.rel (%p76) target = $region65
          $region62: #{forward.6} parent=57 // loop_body
            %v82 = vld [vmem:[%s80] sm:$0xf]
            %83 = vst [vmem:[%s81] sm:$0xf] %v82
            %v84 = vld [vmem:[%s80 + $0x8] sm:$0xf]
            %85 = vst [vmem:[%s81 + $0x4] sm:$0xf] %v84
            %v86 = vld [vmem:[%s80 + $0x10] sm:$0xf]
            %87 = vst [vmem:[%s81 + $0x8] sm:$0xf] %v86
            %v88 = vld [vmem:[%s80 + $0x18] sm:$0xf]
            %89 = vst [vmem:[%s81 + $0xc] sm:$0xf] %v88
          $region63: #{forward.6} parent=57 // loop_footer
            %s79 = sadd.s32 1, %s75
          $region64: #{forward.6} parent=57 // loop_footer_branch
            %74 = sbr.rel target = $region60
          $region65: #{forward.6} parent=57 // loop_exit
            _
        $region58: #{forward.6} parent=49 // pred_fallthru
          _
      $region50: #{forward.6} parent=45 // pred_fallthru
        _
      %117 = vnop
    $region46: #{forward.6} parent=1 // pred_fallthru
      _
    // Predicated region
    $region84: #{forward.6} parent=1 // pred_check
      _
    $region85: #{forward.6} parent=1 // pred_check_branch
      %119 = sbr.rel (0) target = $region87
    $region86: #{forward.6} parent=1 // pred_region
      _
    $region87: #{forward.6} parent=1 // pred_fallthru
      _
    // Predicated region
    $region88: #{forward.6} parent=1 // pred_check
      _
    $region89: #{forward.6} parent=1 // pred_check_branch
      %121 = sbr.rel (0) target = $region91
    $region90: #{forward.6} parent=1 // pred_region
      _
    $region91: #{forward.6} parent=1 // pred_fallthru
      _
    // Predicated region
    $region92: #{forward.6} parent=1 // pred_check
      _
    $region93: #{forward.6} parent=1 // pred_check_branch
      %123 = sbr.rel (0) target = $region95
    $region94: #{forward.6} parent=1 // pred_region
      _
    $region95: #{forward.6} parent=1 // pred_fallthru
      _
    // Predicated region
    $region96: #{forward.6} parent=1 // pred_check
      _
    $region97: #{forward.6} parent=1 // pred_check_branch
      %125 = sbr.rel (0) target = $region99
    $region98: #{forward.6} parent=1 // pred_region
      _
    $region99: #{forward.6} parent=1 // pred_fallthru
      _
    %s126 = sadd.s32 0, 1
    %v128 = vld [vmem:[#allocation2] sm:$0xf]
    %v129 = vld [vmem:[#allocation2 + $0x4] sm:$0xf]
    %v130 = vld [vmem:[#allocation2 + $0x8] sm:$0xf]
    %v131 = vld [vmem:[#allocation2 + $0xc] sm:$0xf]
    %v132 = vld [vmem:[#allocation3] sm:$0xf]
    %v133 = vld [vmem:[#allocation3 + $0x4] sm:$0xf]
    %v134 = vld [vmem:[#allocation3 + $0x8] sm:$0xf]
    %v135 = vld [vmem:[#allocation3 + $0xc] sm:$0xf]
    %v140 = vunpack.c.l.b16 %v128
    %v141 = vunpack.c.l.b16 %v129
    %v142 = vunpack.c.l.b16 %v130
    %v143 = vunpack.c.l.b16 %v131
    %v144 = vpack.c.b16 %v141, %v140
    %v145 = vpack.c.b16 %v143, %v142
    %v152 = vunpack.c.l.b16 %v132
    %v153 = vunpack.c.l.b16 %v133
    %v154 = vunpack.c.l.b16 %v134
    %v155 = vunpack.c.l.b16 %v135
    %v156 = vpack.c.b16 %v153, %v152
    %v157 = vpack.c.b16 %v155, %v154
    %158 = vrot.lane.b32.xlu0 %v144, 127
    %v159 = vpop.permute.xlu0 %158
    %160 = vrot.lane.b32.xlu0 %v156, 127
    %v161 = vpop.permute.xlu0 %160
    %162 = vrot.lane.b32.xlu0 %v145, 127
    %v163 = vpop.permute.xlu0 %162
    %164 = vrot.lane.b32.xlu0 %v157, 127
    %v165 = vpop.permute.xlu0 %164
    %vm166 = vcmask 1039360
    %v167 = vsel %vm166, %v159, %v161
    %v168 = vsel %vm166, %v163, %v165
    %171 = vrot.lane.b32.xlu0 %v144, 123
    %v172 = vpop.permute.xlu0 %171
    %173 = vrot.lane.b32.xlu0 %v156, 123
    %v174 = vpop.permute.xlu0 %173
    %175 = vrot.lane.b32.xlu0 %v145, 123
    %v176 = vpop.permute.xlu0 %175
    %177 = vrot.lane.b32.xlu0 %v157, 123
    %v178 = vpop.permute.xlu0 %177
    %vm179 = vcmask 1006592
    %v180 = vsel %vm179, %v172, %v174
    %v181 = vsel %vm179, %v176, %v178
    %184 = vrot.lane.b32.xlu0 %v144, 122
    %v185 = vpop.permute.xlu0 %184
    %186 = vrot.lane.b32.xlu0 %v156, 122
    %v187 = vpop.permute.xlu0 %186
    %188 = vrot.lane.b32.xlu0 %v145, 122
    %v189 = vpop.permute.xlu0 %188
    %190 = vrot.lane.b32.xlu0 %v157, 122
    %v191 = vpop.permute.xlu0 %190
    %vm192 = vcmask 998400
    %v193 = vsel %vm192, %v185, %v187
    %v194 = vsel %vm192, %v189, %v191
    %v197 = vld [vmem:[%s2] sm:$0xf]
    %v198 = vld [vmem:[%s2 + $0x4] sm:$0xf]
    %v199 = vld [vmem:[%s3] sm:$0xff]
    %v200 = vld [vmem:[%s3 + $0x8] sm:$0xff]
    %202 = vset.pattern.permute.xlu0 0
    %203 = vperm.xlu0 %202, %v199
    %v204 = vpop.permute.xlu0 %203
    %207 = vset.pattern.permute.xlu0 0
    %208 = vperm.xlu0 %207, %v200
    %v209 = vpop.permute.xlu0 %208
    %v213 = vunpack.c.l.b16 %v197
    %v214 = vunpack.c.l.b16 %v198
    %v215 = vpack.c.b16 %v214, %v213
    %217 = vmatprep.subr.bf16.mxu0 0
    %218 = vmatpush1.bf16.msra.mxu0 %v144
    %219 = vmatprep.subr.bf16.mxu0 0
    %220 = vmatpush1.bf16.msra.mxu0 %v145
    %221 = vmatprep.subr.bf16.mxu0 0
    %222 = vmatpush1.bf16.msra.mxu0 %v167
    %223 = vmatprep.subr.bf16.mxu0 0
    %224 = vmatpush1.bf16.msra.mxu0 %v168
    %225 = vmatprep.subr.bf16.mxu0 0
    %226 = vmatpush1.bf16.msra.mxu0 %v180
    %227 = vmatprep.subr.bf16.mxu0 0
    %228 = vmatpush1.bf16.msra.mxu0 %v181
    %229 = vmatprep.subr.bf16.mxu0 0
    %230 = vmatpush1.bf16.msra.mxu0 %v193
    %231 = vmatprep.subr.bf16.mxu0 0
    %232 = vmatpush1.bf16.msra.mxu0 %v194
    %233 = vmatprep.subr.bf16.mxu0 0
    %234 = vmatpush1.bf16.msra.mxu0 0
    %235 = vmatprep.subr.bf16.mxu0 0
    %236 = vmatpush1.bf16.msra.mxu0 0
    %237 = vmatprep.subr.bf16.mxu0 0
    %238 = vmatpush1.bf16.msra.mxu0 0
    %239 = vmatprep.subr.bf16.mxu0 0
    %240 = vmatpush1.bf16.msra.mxu0 0
    %241 = vmatprep.subr.bf16.mxu0 0
    %242 = vmatpush1.bf16.msra.mxu0 0
    %243 = vmatprep.subr.bf16.mxu0 0
    %244 = vmatpush1.bf16.msra.mxu0 0
    %245 = vmatprep.subr.bf16.mxu0 0
    %246 = vmatpush1.bf16.msra.mxu0 0
    %247 = vmatprep.subr.bf16.mxu0 0
    %248 = vmatpush1.bf16.msra.mxu0 0
    %249 = vmatprep.mubr.bf16.mxu0 0
    %250 = vmatmul.mubr.bf16.gmra.mrb[0].mxu0 %v215
    %v251 = vpop.f32.mrb[0].mxu0
    %v252 = vadd.f32 %v204, %v251
    %v253 = vpop.f32.mrb[0].mxu0
    %v254 = vpop.f32.mrb[0].mxu0
    %v255 = vadd.f32 %v209, %v254
    %v256 = vpop.f32.mrb[0].mxu0
    %257 = vdwg.mxu0
    %vm258 = vcmp.ge.f32.partialorder %v252, 0.0
    %vm259 = vcmp.ge.f32.partialorder %v255, 0.0
    %v260 = vmul.f32 %v252, 0.2
    %v261 = vmul.f32 %v255, 0.2
    %v262 = vsel %vm258, %v252, %v260
    %v263 = vsel %vm259, %v255, %v261
    %v264 = vpack.c.bf16 %v263, %v262
    %v266 = vunpack.c.l.b16 %v264
    %v267 = vunpack.c.h.b16 %v264
    %v268 = vpack.c.b16 %v266, %v266
    %v269 = vpack.c.b16 %v267, %v267
    %272 = vst [vmem:[%s4] sm:$0xf] %v268
    %273 = vst [vmem:[%s4 + $0x4] sm:$0xf] %v269
    // Predicated region
    $region100: #{forward.6} parent=1 // pred_check
      _
    $region101: #{forward.6} parent=1 // pred_check_branch
      %275 = sbr.rel (0) target = $region103
    $region102: #{forward.6} parent=1 // pred_region
      _
    $region103: #{forward.6} parent=1 // pred_fallthru
      _
    // Predicated region
    $region104: #{forward.6} parent=1 // pred_check
      _
    $region105: #{forward.6} parent=1 // pred_check_branch
      %277 = sbr.rel (0) target = $region107
    $region106: #{forward.6} parent=1 // pred_region
      _
    $region107: #{forward.6} parent=1 // pred_fallthru
      _

// kernel: forward.7
$region0: #{forward.7}
  #allocation0 [shape = 'u32[]', space=smem, size = 0x4, offset = 0x4, fixed_abs, tag = 'smem constant byte address 0x4 - core index']
  #allocation1 [shape = 'u32[144,128]{1,0:T(1,128)}', space=vmem, size = 0x12000, scoped, tag = 'internal scratch']
  #allocation2 [shape = 'f32[16,128]{1,0:T(8,128)}', space=vmem, size = 0x2000, scoped, tag = 'scratch operand']
  %s0 = inlined_call_operand.vmem [shape: bf16[16,256], index: 0, kind: input, shape index: {}]
  %s1 = inlined_call_operand.vmem [shape: bf16[256,256], index: 1, kind: input, shape index: {}]
  %s2 = inlined_call_operand.vmem [shape: f32[1,256], index: 2, kind: input, shape index: {}]
  %s3 = inlined_call_operand.vmem [shape: bf16[256,128], index: 3, kind: input, shape index: {}]
  %s4 = inlined_call_operand.vmem [shape: f32[2,16,128], index: 4, kind: output, shape index: {}]
  %s5 = sld [smem:[#allocation0]]
  $region98: #{forward.7} parent=0
    _
  %s7 = ssub.s32 1, %s5
  %s8 = scalar_select 0, %s7, %s5
  $region1: #{forward.7} parent=0
    #allocation3 [shape = 'u8[131072]{0}', space=vmem, size = 0x20000, scoped, tag = 'input window, operand 1']
    loop: start=0, step=1, limit=4
    $region2: #{forward.7} parent=1 // loop_pre_header
      _
    $region3: #{forward.7} parent=1 // loop_header
      %s10 = sphi 0, %s14
      %p11 = scmp.ge.s32.totalorder %s10, 4
      %s17 = sphi 0, %s36
      %s18 = sphi 0, %s32
      %s19 = sphi 0, %s28
      %s20 = sphi 0, %s17
      %s21 = sphi 0, %s18
      %s22 = sphi 0, %s19
      %s23 = sphi 0, %s20
      %s24 = sphi 0, %s21
      %s25 = sphi 0, %s22
      %s41 = sphi 0, %s43
      %s44 = sphi 0, %s41
      %s45 = sphi 0, %s44
      %s61 = sphi 0, %s45
      %s69 = sphi 0, %s71
      %s72 = sphi 0, %s69
      %s73 = sphi 0, %s72
      %s89 = sphi 0, %s73
      %s95 = sphi 0, %s97
      %s98 = sphi 0, %s95
      %s99 = sphi 0, %s98
      %s115 = sphi 0, %s99
      %s121 = sphi 0, %s123
      %s124 = sphi 0, %s121
      %s125 = sphi 0, %s124
      %s141 = sphi 0, %s125
      %s149 = sphi 0, %s151
      %s152 = sphi 0, %s149
      %s153 = sphi 0, %s152
      %s169 = sphi 0, %s153
    $region4: #{forward.7} parent=1 // loop_header_branch
      %13 = sbr.rel (%p11) target = $region8
    $region5: #{forward.7} parent=1 // loop_body
      %s15 = ssub.s32 %s10, 1
      %s16 = ssub.s32 %s10, 2
      %s26 = sadd.s32 1, %s19
      %p27 = scmp.ge.s32.totalorder %s26, 1
      %s28 = scalar_select %p27, 0, %s26
      %s29 = sadd.s32 1, %s18
      %s30 = scalar_select %p27, %s29, %s18
      %p31 = scmp.ge.s32.totalorder %s30, 2
      %s32 = scalar_select %p31, 0, %s30
      %s33 = sadd.s32 1, %s17
      %s34 = scalar_select %p31, %s33, %s17
      %p35 = scmp.ge.s32.totalorder %s34, 1
      %s36 = scalar_select %p35, 0, %s34
      %s37 = ssub.s32 %s17, %s36
      %s38 = ssub.s32 %s19, %s28
      %s39 = sor.u32 %s37, %s38
      %p40 = scmp.eq.s32.totalorder %s39, 0
      %s42 = sadd.s32 %s41, 1
      %s43 = scalar_select %p40, %s41, %s42
      %p46 = pneg %p40
      %p47 = scmp.eq.s32.totalorder %s10, 1
      %p48 = por %p46, %p47
      %p49 = scmp.ne.s32.totalorder %s41, %s44
      %p50 = scmp.eq.s32.totalorder %s10, 0
      %p51 = por %p49, %p50
      %p52 = scmp.ne.s32.totalorder %s41, %s44
      %p53 = scmp.eq.s32.totalorder %s15, 1
      %p54 = por %p52, %p53
      %p55 = scmp.ne.s32.totalorder %s44, %s45
      %p56 = scmp.eq.s32.totalorder %s15, 0
      %p57 = por %p55, %p56
      %p58 = scmp.ne.s32.totalorder %s44, %s45
      %p59 = scmp.eq.s32.totalorder %s16, 1
      %p60 = por %p58, %p59
      %p62 = scmp.ne.s32.totalorder %s45, %s61
      %p63 = scmp.eq.s32.totalorder %s16, 0
      %p64 = por %p62, %p63
      %s65 = ssub.s32 %s19, %s28
      %s66 = ssub.s32 %s18, %s32
      %s67 = sor.u32 %s65, %s66
      %p68 = scmp.eq.s32.totalorder %s67, 0
      %s70 = sadd.s32 %s69, 1
      %s71 = scalar_select %p68, %s69, %s70
      %p74 = pneg %p68
      %p75 = scmp.eq.s32.totalorder %s10, 1
      %p76 = por %p74, %p75
      %p77 = scmp.ne.s32.totalorder %s69, %s72
      %p78 = scmp.eq.s32.totalorder %s10, 0
      %p79 = por %p77, %p78
      %p80 = scmp.ne.s32.totalorder %s69, %s72
      %p81 = scmp.eq.s32.totalorder %s15, 1
      %p82 = por %p80, %p81
      %p83 = scmp.ne.s32.totalorder %s72, %s73
      %p84 = scmp.eq.s32.totalorder %s15, 0
      %p85 = por %p83, %p84
      %p86 = scmp.ne.s32.totalorder %s72, %s73
      %p87 = scmp.eq.s32.totalorder %s16, 1
      %p88 = por %p86, %p87
      %p90 = scmp.ne.s32.totalorder %s73, %s89
      %p91 = scmp.eq.s32.totalorder %s16, 0
      %p92 = por %p90, %p91
      %s93 = ssub.s32 %s18, %s32
      %p94 = scmp.eq.s32.totalorder %s93, 0
      %s96 = sadd.s32 %s95, 1
      %s97 = scalar_select %p94, %s95, %s96
      %p100 = pneg %p94
      %p101 = scmp.eq.s32.totalorder %s10, 1
      %p102 = por %p100, %p101
      %p103 = scmp.ne.s32.totalorder %s95, %s98
      %p104 = scmp.eq.s32.totalorder %s10, 0
      %p105 = por %p103, %p104
      %p106 = scmp.ne.s32.totalorder %s95, %s98
      %p107 = scmp.eq.s32.totalorder %s15, 1
      %p108 = por %p106, %p107
      %p109 = scmp.ne.s32.totalorder %s98, %s99
      %p110 = scmp.eq.s32.totalorder %s15, 0
      %p111 = por %p109, %p110
      %p112 = scmp.ne.s32.totalorder %s98, %s99
      %p113 = scmp.eq.s32.totalorder %s16, 1
      %p114 = por %p112, %p113
      %p116 = scmp.ne.s32.totalorder %s99, %s115
      %p117 = scmp.eq.s32.totalorder %s16, 0
      %p118 = por %p116, %p117
      %s119 = ssub.s32 %s18, %s32
      %p120 = scmp.eq.s32.totalorder %s119, 0
      %s122 = sadd.s32 %s121, 1
      %s123 = scalar_select %p120, %s121, %s122
      %p126 = pneg %p120
      %p127 = scmp.eq.s32.totalorder %s10, 1
      %p128 = por %p126, %p127
      %p129 = scmp.ne.s32.totalorder %s121, %s124
      %p130 = scmp.eq.s32.totalorder %s10, 0
      %p131 = por %p129, %p130
      %p132 = scmp.ne.s32.totalorder %s121, %s124
      %p133 = scmp.eq.s32.totalorder %s15, 1
      %p134 = por %p132, %p133
      %p135 = scmp.ne.s32.totalorder %s124, %s125
      %p136 = scmp.eq.s32.totalorder %s15, 0
      %p137 = por %p135, %p136
      %p138 = scmp.ne.s32.totalorder %s124, %s125
      %p139 = scmp.eq.s32.totalorder %s16, 1
      %p140 = por %p138, %p139
      %p142 = scmp.ne.s32.totalorder %s125, %s141
      %p143 = scmp.eq.s32.totalorder %s16, 0
      %p144 = por %p142, %p143
      %s145 = ssub.s32 %s18, %s32
      %s146 = ssub.s32 %s17, %s36
      %s147 = sor.u32 %s145, %s146
      %p148 = scmp.eq.s32.totalorder %s147, 0
      %s150 = sadd.s32 %s149, 1
      %s151 = scalar_select %p148, %s149, %s150
      %p154 = pneg %p148
      %p155 = scmp.eq.s32.totalorder %s10, 1
      %p156 = por %p154, %p155
      %p157 = scmp.ne.s32.totalorder %s149, %s152
      %p158 = scmp.eq.s32.totalorder %s10, 0
      %p159 = por %p157, %p158
      %p160 = scmp.ne.s32.totalorder %s149, %s152
      %p161 = scmp.eq.s32.totalorder %s15, 1
      %p162 = por %p160, %p161
      %p163 = scmp.ne.s32.totalorder %s152, %s153
      %p164 = scmp.eq.s32.totalorder %s15, 0
      %p165 = por %p163, %p164
      %p166 = scmp.ne.s32.totalorder %s152, %s153
      %p167 = scmp.eq.s32.totalorder %s16, 1
      %p168 = por %p166, %p167
      %p170 = scmp.ne.s32.totalorder %s153, %s169
      %p171 = scmp.eq.s32.totalorder %s16, 0
      %p172 = por %p170, %p171
      %p173 = scmp.le.s32.totalorder 1, %s10
      %p174 = scmp.lt.s32.totalorder %s10, 3
      %p175 = pnand %p173, %p174
      %p176 = pneg %p175
      // Predicated region
      $region9: #{forward.7} parent=5 // pred_check
        _
      $region10: #{forward.7} parent=5 // pred_check_branch
        %178 = sbr.rel (%p175) target = $region12
      $region11: #{forward.7} parent=5 // pred_region
        %s179 = ssub.s32 %s10, 1
        // Predicated region
        $region13: #{forward.7} parent=11 // pred_check
          %p180 = pneg %p57
        $region14: #{forward.7} parent=11 // pred_check_branch
          %182 = sbr.rel (%p180) target = $region16
        $region15: #{forward.7} parent=11 // pred_region
          %s183 = smul.u32 2, %s20
          %s184 = smul.u32 2, %s22
          %p185 = scmp.lt.s32.totalorder %s183, 1
          %s186 = scalar_select %p185, %s183, 1
          %p187 = scmp.lt.s32.totalorder %s184, 1
          %s188 = scalar_select %p187, %s184, 1
          %s189 = smul.addr %s186, 2
          %s190 = sadd.s32 %s188, %s189
          %s191 = smul.addr %s190, 4
          %s192 = scalar_lea.vmem %s0, %s191
          %s193 = smul.u32 2, %s20
          %s194 = smul.u32 2, %s22
        $region16: #{forward.7} parent=11 // pred_fallthru
          _
      $region12: #{forward.7} parent=5 // pred_fallthru
        _
      %p195 = scmp.lt.s32.totalorder %s10, 2
      // Predicated region
      $region17: #{forward.7} parent=5 // pred_check
        %p196 = pneg %p195
      $region18: #{forward.7} parent=5 // pred_check_branch
        %198 = sbr.rel (%p196) target = $region20
      $region19: #{forward.7} parent=5 // pred_region
        // Predicated region
        $region21: #{forward.7} parent=19 // pred_check
          %p199 = pneg %p79
        $region22: #{forward.7} parent=19 // pred_check_branch
          %201 = sbr.rel (%p199) target = $region24
        $region23: #{forward.7} parent=19 // pred_region
          %s202 = sand.u32 %s69, 1
          %s203 = sand.u32 %s69, 1
          %s204 = smul.addr %s203, 128
          %s205 = scalar_lea.vmem [#allocation3], %s204
          %s206 = smul.u32 32, %s19
          %s207 = smul.addr %s206, 2
          %s208 = sadd.s32 %s18, %s207
          %s209 = smul.addr %s208, 4
          %s210 = scalar_lea.vmem %s1, %s209
          // Predicated region
          $region25: #{forward.7} parent=23 // pred_check
            _
          $region26: #{forward.7} parent=23 // pred_check_branch
            %212 = sbr.rel (0) target = $region28
          $region27: #{forward.7} parent=23 // pred_region
            // Predicated region
            $region29: #{forward.7} parent=27 // pred_check
              _
            $region30: #{forward.7} parent=27 // pred_check_branch
              %214 = sbr.rel target = $region32
            $region31: #{forward.7} parent=27 // pred_region
              // Predicated region
              $region44: #{forward.7} parent=31 // pred_check
                _
              $region45: #{forward.7} parent=31 // pred_check_branch
                %291 = sbr.rel (0) target = $region47
              $region46: #{forward.7} parent=31 // pred_region
                loop: start=0, step=1, limit=1
                $region48: #{forward.7} parent=46 // loop_pre_header
                  _
                $region49: #{forward.7} parent=46 // loop_header
                  %s293 = sphi 0, %s297
                  %p294 = scmp.ge.s32.totalorder %s293, 1
                  %s298 = sphi %s210, %s210
                  %s299 = sphi %s205, %s205
                $region50: #{forward.7} parent=46 // loop_header_branch
                  %296 = sbr.rel (%p294) target = $region54
                $region51: #{forward.7} parent=46 // loop_body
                  _
                $region52: #{forward.7} parent=46 // loop_footer
                  %s297 = sadd.s32 1, %s293
                $region53: #{forward.7} parent=46 // loop_footer_branch
                  %292 = sbr.rel target = $region49
                $region54: #{forward.7} parent=46 // loop_exit
                  _
                loop: start=0, step=1, limit=1
                $region55: #{forward.7} parent=46 // loop_pre_header
                  _
                $region56: #{forward.7} parent=46 // loop_header
                  %s302 = sphi 0, %s306
                  %p303 = scmp.ge.s32.totalorder %s302, 1
                  %s307 = sphi %s210, %s210
                  %s308 = sphi %s205, %s205
                $region57: #{forward.7} parent=46 // loop_header_branch
                  %305 = sbr.rel (%p303) target = $region61
                $region58: #{forward.7} parent=46 // loop_body
                  %v309 = vld [vmem:[%s307] sm:$0xf]
                  %310 = vst [vmem:[%s308] sm:$0xf] %v309
                  %v311 = vld [vmem:[%s307 + $0x8] sm:$0xf]
                  %312 = vst [vmem:[%s308 + $0x4] sm:$0xf] %v311
                  %v313 = vld [vmem:[%s307 + $0x10] sm:$0xf]
                  %314 = vst [vmem:[%s308 + $0x8] sm:$0xf] %v313
                  %v315 = vld [vmem:[%s307 + $0x18] sm:$0xf]
                  %316 = vst [vmem:[%s308 + $0xc] sm:$0xf] %v315
                  %v317 = vld [vmem:[%s307 + $0x20] sm:$0xf]
                  %318 = vst [vmem:[%s308 + $0x10] sm:$0xf] %v317
                  %v319 = vld [vmem:[%s307 + $0x28] sm:$0xf]
                  %320 = vst [vmem:[%s308 + $0x14] sm:$0xf] %v319
                  %v321 = vld [vmem:[%s307 + $0x30] sm:$0xf]
                  %322 = vst [vmem:[%s308 + $0x18] sm:$0xf] %v321
                  %v323 = vld [vmem:[%s307 + $0x38] sm:$0xf]
                  %324 = vst [vmem:[%s308 + $0x1c] sm:$0xf] %v323
                  %v325 = vld [vmem:[%s307 + $0x40] sm:$0xf]
                  %326 = vst [vmem:[%s308 + $0x20] sm:$0xf] %v325
                  %v327 = vld [vmem:[%s307 + $0x48] sm:$0xf]
                  %328 = vst [vmem:[%s308 + $0x24] sm:$0xf] %v327
                  %v329 = vld [vmem:[%s307 + $0x50] sm:$0xf]
                  %330 = vst [vmem:[%s308 + $0x28] sm:$0xf] %v329
                  %v331 = vld [vmem:[%s307 + $0x58] sm:$0xf]
                  %332 = vst [vmem:[%s308 + $0x2c] sm:$0xf] %v331
                  %v333 = vld [vmem:[%s307 + $0x60] sm:$0xf]
                  %334 = vst [vmem:[%s308 + $0x30] sm:$0xf] %v333
                  %v335 = vld [vmem:[%s307 + $0x68] sm:$0xf]
                  %336 = vst [vmem:[%s308 + $0x34] sm:$0xf] %v335
                  %v337 = vld [vmem:[%s307 + $0x70] sm:$0xf]
                  %338 = vst [vmem:[%s308 + $0x38] sm:$0xf] %v337
                  %v339 = vld [vmem:[%s307 + $0x78] sm:$0xf]
                  %340 = vst [vmem:[%s308 + $0x3c] sm:$0xf] %v339
                  %v341 = vld [vmem:[%s307 + $0x80] sm:$0xf]
                  %342 = vst [vmem:[%s308 + $0x40] sm:$0xf] %v341
                  %v343 = vld [vmem:[%s307 + $0x88] sm:$0xf]
                  %344 = vst [vmem:[%s308 + $0x44] sm:$0xf] %v343
                  %v345 = vld [vmem:[%s307 + $0x90] sm:$0xf]
                  %346 = vst [vmem:[%s308 + $0x48] sm:$0xf] %v345
                  %v347 = vld [vmem:[%s307 + $0x98] sm:$0xf]
                  %348 = vst [vmem:[%s308 + $0x4c] sm:$0xf] %v347
                  %v349 = vld [vmem:[%s307 + $0xa0] sm:$0xf]
                  %350 = vst [vmem:[%s308 + $0x50] sm:$0xf] %v349
                  %v351 = vld [vmem:[%s307 + $0xa8] sm:$0xf]
                  %352 = vst [vmem:[%s308 + $0x54] sm:$0xf] %v351
                  %v353 = vld [vmem:[%s307 + $0xb0] sm:$0xf]
                  %354 = vst [vmem:[%s308 + $0x58] sm:$0xf] %v353
                  %v355 = vld [vmem:[%s307 + $0xb8] sm:$0xf]
                  %356 = vst [vmem:[%s308 + $0x5c] sm:$0xf] %v355
                  %v357 = vld [vmem:[%s307 + $0xc0] sm:$0xf]
                  %358 = vst [vmem:[%s308 + $0x60] sm:$0xf] %v357
                  %v359 = vld [vmem:[%s307 + $0xc8] sm:$0xf]
                  %360 = vst [vmem:[%s308 + $0x64] sm:$0xf] %v359
                  %v361 = vld [vmem:[%s307 + $0xd0] sm:$0xf]
                  %362 = vst [vmem:[%s308 + $0x68] sm:$0xf] %v361
                  %v363 = vld [vmem:[%s307 + $0xd8] sm:$0xf]
                  %364 = vst [vmem:[%s308 + $0x6c] sm:$0xf] %v363
                  %v365 = vld [vmem:[%s307 + $0xe0] sm:$0xf]
                  %366 = vst [vmem:[%s308 + $0x70] sm:$0xf] %v365
                  %v367 = vld [vmem:[%s307 + $0xe8] sm:$0xf]
                  %368 = vst [vmem:[%s308 + $0x74] sm:$0xf] %v367
                  %v369 = vld [vmem:[%s307 + $0xf0] sm:$0xf]
                  %370 = vst [vmem:[%s308 + $0x78] sm:$0xf] %v369
                  %v371 = vld [vmem:[%s307 + $0xf8] sm:$0xf]
                  %372 = vst [vmem:[%s308 + $0x7c] sm:$0xf] %v371
                $region59: #{forward.7} parent=46 // loop_footer
                  %s306 = sadd.s32 1, %s302
                $region60: #{forward.7} parent=46 // loop_footer_branch
                  %301 = sbr.rel target = $region56
                $region61: #{forward.7} parent=46 // loop_exit
                  _
              $region47: #{forward.7} parent=31 // pred_fallthru
                _
            $region32: #{forward.7} parent=27 // pred_fallthru
              _
            // Predicated region
            $region33: #{forward.7} parent=27 // pred_check
              _
            $region34: #{forward.7} parent=27 // pred_check_branch
              %216 = sbr.rel (0) target = $region36
            $region35: #{forward.7} parent=27 // pred_region
              loop: start=0, step=1, limit=1
              $region37: #{forward.7} parent=35 // loop_pre_header
                _
              $region38: #{forward.7} parent=35 // loop_header
                %s219 = sphi 0, %s223
                %p220 = scmp.ge.s32.totalorder %s219, 1
                %s224 = sphi %s210, %s210
                %s225 = sphi %s205, %s205
              $region39: #{forward.7} parent=35 // loop_header_branch
                %222 = sbr.rel (%p220) target = $region43
              $region40: #{forward.7} parent=35 // loop_body
                %v226 = vld [vmem:[%s224] sm:$0xf]
                %227 = vst [vmem:[%s225] sm:$0xf] %v226
                %v228 = vld [vmem:[%s224 + $0x8] sm:$0xf]
                %229 = vst [vmem:[%s225 + $0x4] sm:$0xf] %v228
                %v230 = vld [vmem:[%s224 + $0x10] sm:$0xf]
                %231 = vst [vmem:[%s225 + $0x8] sm:$0xf] %v230
                %v232 = vld [vmem:[%s224 + $0x18] sm:$0xf]
                %233 = vst [vmem:[%s225 + $0xc] sm:$0xf] %v232
                %v234 = vld [vmem:[%s224 + $0x20] sm:$0xf]
                %235 = vst [vmem:[%s225 + $0x10] sm:$0xf] %v234
                %v236 = vld [vmem:[%s224 + $0x28] sm:$0xf]
                %237 = vst [vmem:[%s225 + $0x14] sm:$0xf] %v236
                %v238 = vld [vmem:[%s224 + $0x30] sm:$0xf]
                %239 = vst [vmem:[%s225 + $0x18] sm:$0xf] %v238
                %v240 = vld [vmem:[%s224 + $0x38] sm:$0xf]
                %241 = vst [vmem:[%s225 + $0x1c] sm:$0xf] %v240
                %v242 = vld [vmem:[%s224 + $0x40] sm:$0xf]
                %243 = vst [vmem:[%s225 + $0x20] sm:$0xf] %v242
                %v244 = vld [vmem:[%s224 + $0x48] sm:$0xf]
                %245 = vst [vmem:[%s225 + $0x24] sm:$0xf] %v244
                %v246 = vld [vmem:[%s224 + $0x50] sm:$0xf]
                %247 = vst [vmem:[%s225 + $0x28] sm:$0xf] %v246
                %v248 = vld [vmem:[%s224 + $0x58] sm:$0xf]
                %249 = vst [vmem:[%s225 + $0x2c] sm:$0xf] %v248
                %v250 = vld [vmem:[%s224 + $0x60] sm:$0xf]
                %251 = vst [vmem:[%s225 + $0x30] sm:$0xf] %v250
                %v252 = vld [vmem:[%s224 + $0x68] sm:$0xf]
                %253 = vst [vmem:[%s225 + $0x34] sm:$0xf] %v252
                %v254 = vld [vmem:[%s224 + $0x70] sm:$0xf]
                %255 = vst [vmem:[%s225 + $0x38] sm:$0xf] %v254
                %v256 = vld [vmem:[%s224 + $0x78] sm:$0xf]
                %257 = vst [vmem:[%s225 + $0x3c] sm:$0xf] %v256
                %v258 = vld [vmem:[%s224 + $0x80] sm:$0xf]
                %259 = vst [vmem:[%s225 + $0x40] sm:$0xf] %v258
                %v260 = vld [vmem:[%s224 + $0x88] sm:$0xf]
                %261 = vst [vmem:[%s225 + $0x44] sm:$0xf] %v260
                %v262 = vld [vmem:[%s224 + $0x90] sm:$0xf]
                %263 = vst [vmem:[%s225 + $0x48] sm:$0xf] %v262
                %v264 = vld [vmem:[%s224 + $0x98] sm:$0xf]
                %265 = vst [vmem:[%s225 + $0x4c] sm:$0xf] %v264
                %v266 = vld [vmem:[%s224 + $0xa0] sm:$0xf]
                %267 = vst [vmem:[%s225 + $0x50] sm:$0xf] %v266
                %v268 = vld [vmem:[%s224 + $0xa8] sm:$0xf]
                %269 = vst [vmem:[%s225 + $0x54] sm:$0xf] %v268
                %v270 = vld [vmem:[%s224 + $0xb0] sm:$0xf]
                %271 = vst [vmem:[%s225 + $0x58] sm:$0xf] %v270
                %v272 = vld [vmem:[%s224 + $0xb8] sm:$0xf]
                %273 = vst [vmem:[%s225 + $0x5c] sm:$0xf] %v272
                %v274 = vld [vmem:[%s224 + $0xc0] sm:$0xf]
                %275 = vst [vmem:[%s225 + $0x60] sm:$0xf] %v274
                %v276 = vld [vmem:[%s224 + $0xc8] sm:$0xf]
                %277 = vst [vmem:[%s225 + $0x64] sm:$0xf] %v276
                %v278 = vld [vmem:[%s224 + $0xd0] sm:$0xf]
                %279 = vst [vmem:[%s225 + $0x68] sm:$0xf] %v278
                %v280 = vld [vmem:[%s224 + $0xd8] sm:$0xf]
                %281 = vst [vmem:[%s225 + $0x6c] sm:$0xf] %v280
                %v282 = vld [vmem:[%s224 + $0xe0] sm:$0xf]
                %283 = vst [vmem:[%s225 + $0x70] sm:$0xf] %v282
                %v284 = vld [vmem:[%s224 + $0xe8] sm:$0xf]
                %285 = vst [vmem:[%s225 + $0x74] sm:$0xf] %v284
                %v286 = vld [vmem:[%s224 + $0xf0] sm:$0xf]
                %287 = vst [vmem:[%s225 + $0x78] sm:$0xf] %v286
                %v288 = vld [vmem:[%s224 + $0xf8] sm:$0xf]
                %289 = vst [vmem:[%s225 + $0x7c] sm:$0xf] %v288
              $region41: #{forward.7} parent=35 // loop_footer
                %s223 = sadd.s32 1, %s219
              $region42: #{forward.7} parent=35 // loop_footer_branch
                %218 = sbr.rel target = $region38
              $region43: #{forward.7} parent=35 // loop_exit
                _
            $region36: #{forward.7} parent=27 // pred_fallthru
              _
          $region28: #{forward.7} parent=23 // pred_fallthru
            _
          %373 = vnop
        $region24: #{forward.7} parent=19 // pred_fallthru
          _
        // Predicated region
        $region62: #{forward.7} parent=19 // pred_check
          %p374 = pneg %p105
        $region63: #{forward.7} parent=19 // pred_check_branch
          %376 = sbr.rel (%p374) target = $region65
        $region64: #{forward.7} parent=19 // pred_region
          %p377 = scmp.lt.s32.totalorder %s18, 1
          %s378 = scalar_select %p377, %s18, 1
          %s379 = scalar_lea.vmem %s2, %s378
        $region65: #{forward.7} parent=19 // pred_fallthru
          _
        // Predicated region
        $region66: #{forward.7} parent=19 // pred_check
          %p380 = pneg %p131
        $region67: #{forward.7} parent=19 // pred_check_branch
          %382 = sbr.rel (%p380) target = $region69
        $region68: #{forward.7} parent=19 // pred_region
          %s383 = smul.u32 16, %s18
          %p384 = scmp.lt.s32.totalorder %s383, 31
          %s385 = scalar_select %p384, %s383, 31
          %s386 = smul.addr %s385, 4
          %s387 = scalar_lea.vmem %s3, %s386
          %s388 = smul.u32 16, %s18
        $region69: #{forward.7} parent=19 // pred_fallthru
          _
      $region20: #{forward.7} parent=5 // pred_fallthru
        _
      %p389 = scmp.le.s32.totalorder 1, %s10
      %p390 = scmp.lt.s32.totalorder %s10, 3
      %p391 = pnand %p389, %p390
      %p392 = pneg %p391
      // Predicated region
      $region70: #{forward.7} parent=5 // pred_check
        _
      $region71: #{forward.7} parent=5 // pred_check_branch
        %394 = sbr.rel (%p391) target = $region73
      $region72: #{forward.7} parent=5 // pred_region
        %s395 = ssub.s32 %s10, 1
        %s396 = sand.u32 %s72, 1
        %s397 = sand.u32 %s72, 1
        %s398 = smul.addr %s397, 128
        %s399 = scalar_lea.vmem [#allocation3], %s398
        // Predicated region
        $region74: #{forward.7} parent=72 // pred_check
          %p400 = pneg %p85
        $region75: #{forward.7} parent=72 // pred_check_branch
          %402 = sbr.rel (%p400) target = $region77
        $region76: #{forward.7} parent=72 // pred_region
          _
        $region77: #{forward.7} parent=72 // pred_fallthru
          _
        %s403 = smul.u32 2, %s20
        %s404 = smul.u32 2, %s22
        %p405 = scmp.lt.s32.totalorder %s403, 1
        %s406 = scalar_select %p405, %s403, 1
        %p407 = scmp.lt.s32.totalorder %s404, 1
        %s408 = scalar_select %p407, %s404, 1
        %s409 = smul.addr %s406, 2
        %s410 = sadd.s32 %s408, %s409
        %s411 = smul.addr %s410, 4
        %s412 = scalar_lea.vmem %s0, %s411
        %p413 = pneg %p57
        %p414 = pneg %p54
        %s415 = sand.u32 %s72, 1
        %s416 = sand.u32 %s72, 1
        %s417 = smul.addr %s416, 128
        %s418 = scalar_lea.vmem [#allocation3], %s417
        %p419 = pneg %p85
        %p420 = pneg %p82
        %p421 = scmp.lt.s32.totalorder %s21, 1
        %s422 = scalar_select %p421, %s21, 1
        %s423 = scalar_lea.vmem %s2, %s422
        %p424 = pneg %p111
        %p425 = pneg %p108
        %s426 = smul.u32 16, %s21
        %p427 = scmp.lt.s32.totalorder %s426, 31
        %s428 = scalar_select %p427, %s426, 31
        %s429 = smul.addr %s428, 4
        %s430 = scalar_lea.vmem %s3, %s429
        %p431 = pneg %p137
        %p432 = pneg %p134
        %p433 = pneg %p165
        %p434 = pneg %p162
        %s435 = smul.u32 2, %s20
        %p436 = scmp.lt.s32.totalorder %s21, 1
        %s437 = scalar_select %p436, %s21, 1
        %p438 = scmp.lt.s32.totalorder %s435, 1
        %s439 = scalar_select %p438, %s435, 1
        %s440 = smul.addr %s437, 2
        %s441 = sadd.s32 %s439, %s440
        %s442 = smul.addr %s441, 8
        %s443 = scalar_lea.vmem %s4, %s442
        %s444 = smul.u32 2, %s20
        %s445 = smul.u32 2, %s22
        %p446 = scmp.lt.s32.totalorder %s444, 1
        %s447 = scalar_select %p446, %s444, 1
        %p448 = scmp.lt.s32.totalorder %s445, 1
        %s449 = scalar_select %p448, %s445, 1
        %s450 = smul.addr %s447, 2
        %s451 = sadd.s32 %s449, %s450
        %s452 = smul.addr %s451, 4
        %s453 = scalar_lea.vmem %s0, %s452
        %s454 = smul.u32 2, %s20
        %s455 = smul.u32 2, %s22
        %s456 = smul.u32 32, %s22
        %p457 = scmp.lt.s32.totalorder %s21, 1
        %s458 = scalar_select %p457, %s21, 1
        %s459 = scalar_lea.vmem %s2, %s458
        %s460 = smul.u32 16, %s21
        %p461 = scmp.lt.s32.totalorder %s460, 31
        %s462 = scalar_select %p461, %s460, 31
        %s463 = smul.addr %s462, 4
        %s464 = scalar_lea.vmem %s3, %s463
        %s465 = smul.u32 16, %s21
        %s466 = smul.u32 2, %s20
        %p467 = scmp.lt.s32.totalorder %s21, 1
        %s468 = scalar_select %p467, %s21, 1
        %p469 = scmp.lt.s32.totalorder %s466, 1
        %s470 = scalar_select %p469, %s466, 1
        %s471 = smul.addr %s468, 2
        %s472 = sadd.s32 %s470, %s471
        %s473 = smul.addr %s472, 8
        %s474 = scalar_lea.vmem %s4, %s473
        %s475 = smul.u32 2, %s20
        %p477 = scmp.eq.s32.totalorder %s22, 0
        // Predicated region
        $region78: #{forward.7} parent=72 // pred_check
          %p478 = pneg %p477
        $region79: #{forward.7} parent=72 // pred_check_branch
          %480 = sbr.rel (%p478) target = $region81
        $region80: #{forward.7} parent=72 // pred_region
          %481 = vst [vmem:[#allocation2] sm:$0xff] 0.0
          %482 = vst [vmem:[#allocation2 + $0x8] sm:$0xff] 0.0
        $region81: #{forward.7} parent=72 // pred_fallthru
          _
        %v483 = vld [vmem:[#allocation2] sm:$0xff]
        %v484 = vld [vmem:[#allocation2 + $0x8] sm:$0xff]
        %v485 = vld [vmem:[%s453] sm:$0xff]
        %v486 = vld [vmem:[%s453 + $0x8] sm:$0xff]
        %v487 = vld [vmem:[%s399] sm:$0xf]
        %v488 = vld [vmem:[%s399 + $0x4] sm:$0xf]
        %v489 = vld [vmem:[%s399 + $0x8] sm:$0xf]
        %v490 = vld [vmem:[%s399 + $0xc] sm:$0xf]
        %v491 = vld [vmem:[%s399 + $0x10] sm:$0xf]
        %v492 = vld [vmem:[%s399 + $0x14] sm:$0xf]
        %v493 = vld [vmem:[%s399 + $0x18] sm:$0xf]
        %v494 = vld [vmem:[%s399 + $0x1c] sm:$0xf]
        %v495 = vld [vmem:[%s399 + $0x20] sm:$0xf]
        %v496 = vld [vmem:[%s399 + $0x24] sm:$0xf]
        %v497 = vld [vmem:[%s399 + $0x28] sm:$0xf]
        %v498 = vld [vmem:[%s399 + $0x2c] sm:$0xf]
        %v499 = vld [vmem:[%s399 + $0x30] sm:$0xf]
        %v500 = vld [vmem:[%s399 + $0x34] sm:$0xf]
        %v501 = vld [vmem:[%s399 + $0x38] sm:$0xf]
        %v502 = vld [vmem:[%s399 + $0x3c] sm:$0xf]
        %v503 = vld [vmem:[%s399 + $0x40] sm:$0xf]
        %v504 = vld [vmem:[%s399 + $0x44] sm:$0xf]
        %v505 = vld [vmem:[%s399 + $0x48] sm:$0xf]
        %v506 = vld [vmem:[%s399 + $0x4c] sm:$0xf]
        %v507 = vld [vmem:[%s399 + $0x50] sm:$0xf]
        %v508 = vld [vmem:[%s399 + $0x54] sm:$0xf]
        %v509 = vld [vmem:[%s399 + $0x58] sm:$0xf]
        %v510 = vld [vmem:[%s399 + $0x5c] sm:$0xf]
        %v511 = vld [vmem:[%s399 + $0x60] sm:$0xf]
        %v512 = vld [vmem:[%s399 + $0x64] sm:$0xf]
        %v513 = vld [vmem:[%s399 + $0x68] sm:$0xf]
        %v514 = vld [vmem:[%s399 + $0x6c] sm:$0xf]
        %v515 = vld [vmem:[%s399 + $0x70] sm:$0xf]
        %v516 = vld [vmem:[%s399 + $0x74] sm:$0xf]
        %v517 = vld [vmem:[%s399 + $0x78] sm:$0xf]
        %v518 = vld [vmem:[%s399 + $0x7c] sm:$0xf]
        %v521 = vunpack.c.l.b16 %v485
        %v522 = vunpack.c.h.b16 %v485
        %v523 = vunpack.c.l.b16 %v486
        %v524 = vunpack.c.h.b16 %v486
        %v525 = vpack.c.b16 %v523, %v521
        %v526 = vpack.c.b16 %v524, %v522
        %v561 = vunpack.c.l.b16 %v487
        %v562 = vunpack.c.l.b16 %v488
        %v563 = vunpack.c.l.b16 %v489
        %v564 = vunpack.c.l.b16 %v490
        %v565 = vunpack.c.l.b16 %v491
        %v566 = vunpack.c.l.b16 %v492
        %v567 = vunpack.c.l.b16 %v493
        %v568 = vunpack.c.l.b16 %v494
        %v569 = vunpack.c.l.b16 %v495
        %v570 = vunpack.c.l.b16 %v496
        %v571 = vunpack.c.l.b16 %v497
        %v572 = vunpack.c.l.b16 %v498
        %v573 = vunpack.c.l.b16 %v499
        %v574 = vunpack.c.l.b16 %v500
        %v575 = vunpack.c.l.b16 %v501
        %v576 = vunpack.c.l.b16 %v502
        %v577 = vunpack.c.l.b16 %v503
        %v578 = vunpack.c.l.b16 %v504
        %v579 = vunpack.c.l.b16 %v505
        %v580 = vunpack.c.l.b16 %v506
        %v581 = vunpack.c.l.b16 %v507
        %v582 = vunpack.c.l.b16 %v508
        %v583 = vunpack.c.l.b16 %v509
        %v584 = vunpack.c.l.b16 %v510
        %v585 = vunpack.c.l.b16 %v511
        %v586 = vunpack.c.l.b16 %v512
        %v587 = vunpack.c.l.b16 %v513
        %v588 = vunpack.c.l.b16 %v514
        %v589 = vunpack.c.l.b16 %v515
        %v590 = vunpack.c.l.b16 %v516
        %v591 = vunpack.c.l.b16 %v517
        %v592 = vunpack.c.l.b16 %v518
        %v593 = vpack.c.b16 %v562, %v561
        %v594 = vpack.c.b16 %v564, %v563
        %v595 = vpack.c.b16 %v566, %v565
        %v596 = vpack.c.b16 %v568, %v567
        %v597 = vpack.c.b16 %v570, %v569
        %v598 = vpack.c.b16 %v572, %v571
        %v599 = vpack.c.b16 %v574, %v573
        %v600 = vpack.c.b16 %v576, %v575
        %v601 = vpack.c.b16 %v578, %v577
        %v602 = vpack.c.b16 %v580, %v579
        %v603 = vpack.c.b16 %v582, %v581
        %v604 = vpack.c.b16 %v584, %v583
        %v605 = vpack.c.b16 %v586, %v585
        %v606 = vpack.c.b16 %v588, %v587
        %v607 = vpack.c.b16 %v590, %v589
        %v608 = vpack.c.b16 %v592, %v591
        %625 = vmatprep.subr.bf16.mxu0 0
        %626 = vmatpush1.bf16.msra.mxu0 %v593
        %627 = vmatprep.subr.bf16.mxu0 0
        %628 = vmatpush1.bf16.msra.mxu0 %v594
        %629 = vmatprep.subr.bf16.mxu0 0
        %630 = vmatpush1.bf16.msra.mxu0 %v595
        %631 = vmatprep.subr.bf16.mxu0 0
        %632 = vmatpush1.bf16.msra.mxu0 %v596
        %633 = vmatprep.subr.bf16.mxu0 0
        %634 = vmatpush1.bf16.msra.mxu0 %v597
        %635 = vmatprep.subr.bf16.mxu0 0
        %636 = vmatpush1.bf16.msra.mxu0 %v598
        %637 = vmatprep.subr.bf16.mxu0 0
        %638 = vmatpush1.bf16.msra.mxu0 %v599
        %639 = vmatprep.subr.bf16.mxu0 0
        %640 = vmatpush1.bf16.msra.mxu0 %v600
        %641 = vmatprep.subr.bf16.mxu0 0
        %642 = vmatpush1.bf16.msra.mxu0 %v601
        %643 = vmatprep.subr.bf16.mxu0 0
        %644 = vmatpush1.bf16.msra.mxu0 %v602
        %645 = vmatprep.subr.bf16.mxu0 0
        %646 = vmatpush1.bf16.msra.mxu0 %v603
        %647 = vmatprep.subr.bf16.mxu0 0
        %648 = vmatpush1.bf16.msra.mxu0 %v604
        %649 = vmatprep.subr.bf16.mxu0 0
        %650 = vmatpush1.bf16.msra.mxu0 %v605
        %651 = vmatprep.subr.bf16.mxu0 0
        %652 = vmatpush1.bf16.msra.mxu0 %v606
        %653 = vmatprep.subr.bf16.mxu0 0
        %654 = vmatpush1.bf16.msra.mxu0 %v607
        %655 = vmatprep.subr.bf16.mxu0 0
        %656 = vmatpush1.bf16.msra.mxu0 %v608
        %657 = vmatprep.mubr.bf16.mxu0 %v526
        %658 = vmatmul.mubr.bf16.gmra.mrb[0].mxu0 %v525
        %v659 = vpop.f32.mrb[0].mxu0
        %v660 = vadd.f32 0.0, %v659
        %v661 = vpop.f32.mrb[0].mxu0
        %v662 = vpop.f32.mrb[0].mxu0
        %v663 = vadd.f32 0.0, %v662
        %v664 = vpop.f32.mrb[0].mxu0
        %665 = vdwg.mxu0
        %v666 = vadd.f32 %v483, %v660
        %v667 = vadd.f32 %v484, %v663
        %668 = vst [vmem:[#allocation2] sm:$0xff] %v666
        %669 = vst [vmem:[#allocation2 + $0x8] sm:$0xff] %v667
        // Predicated region
        $region82: #{forward.7} parent=72 // pred_check
          %p670 = pneg %p477
        $region83: #{forward.7} parent=72 // pred_check_branch
          %672 = sbr.rel (%p670) target = $region85
        $region84: #{forward.7} parent=72 // pred_region
          %v673 = vld [vmem:[#allocation2] sm:$0xff]
          %v674 = vld [vmem:[#allocation2 + $0x8] sm:$0xff]
          %v675 = vld [vmem:[%s459] sm:$0x1]
          %v677 = vlaneseq
          %v678 = vshrl.u32 %v677, 7
          %v679 = vsub.s32 0, %v678
          %v680 = vrot.slane %v675, %v679
          %v682 = vadd.f32 %v673, %v680
          %v683 = vadd.f32 %v674, %v680
          %vm684 = vcmp.ge.f32.partialorder %v682, 0.0
          %vm685 = vcmp.ge.f32.partialorder %v683, 0.0
          %v686 = vmul.f32 %v682, 0.01
          %v687 = vmul.f32 %v683, 0.01
          %v688 = vsel %vm684, %v682, %v686
          %v689 = vsel %vm685, %v683, %v687
          %v690 = vpack.c.bf16 %v689, %v688
          %v691 = vld [vmem:[%s464] sm:$0xf]
          %v692 = vld [vmem:[%s464 + $0x4] sm:$0xf]
          %v693 = vld [vmem:[%s464 + $0x8] sm:$0xf]
          %v694 = vld [vmem:[%s464 + $0xc] sm:$0xf]
          %v695 = vld [vmem:[%s464 + $0x10] sm:$0xf]
          %v696 = vld [vmem:[%s464 + $0x14] sm:$0xf]
          %v697 = vld [vmem:[%s464 + $0x18] sm:$0xf]
          %v698 = vld [vmem:[%s464 + $0x1c] sm:$0xf]
          %v699 = vld [vmem:[%s464 + $0x20] sm:$0xf]
          %v700 = vld [vmem:[%s464 + $0x24] sm:$0xf]
          %v701 = vld [vmem:[%s464 + $0x28] sm:$0xf]
          %v702 = vld [vmem:[%s464 + $0x2c] sm:$0xf]
          %v703 = vld [vmem:[%s464 + $0x30] sm:$0xf]
          %v704 = vld [vmem:[%s464 + $0x34] sm:$0xf]
          %v705 = vld [vmem:[%s464 + $0x38] sm:$0xf]
          %v706 = vld [vmem:[%s464 + $0x3c] sm:$0xf]
          %v723 = vunpack.c.l.b16 %v691
          %v724 = vunpack.c.l.b16 %v692
          %v725 = vunpack.c.l.b16 %v693
          %v726 = vunpack.c.l.b16 %v694
          %v727 = vunpack.c.l.b16 %v695
          %v728 = vunpack.c.l.b16 %v696
          %v729 = vunpack.c.l.b16 %v697
          %v730 = vunpack.c.l.b16 %v698
          %v731 = vunpack.c.l.b16 %v699
          %v732 = vunpack.c.l.b16 %v700
          %v733 = vunpack.c.l.b16 %v701
          %v734 = vunpack.c.l.b16 %v702
          %v735 = vunpack.c.l.b16 %v703
          %v736 = vunpack.c.l.b16 %v704
          %v737 = vunpack.c.l.b16 %v705
          %v738 = vunpack.c.l.b16 %v706
          %v739 = vpack.c.b16 %v724, %v723
          %v740 = vpack.c.b16 %v726, %v725
          %v741 = vpack.c.b16 %v728, %v727
          %v742 = vpack.c.b16 %v730, %v729
          %v743 = vpack.c.b16 %v732, %v731
          %v744 = vpack.c.b16 %v734, %v733
          %v745 = vpack.c.b16 %v736, %v735
          %v746 = vpack.c.b16 %v738, %v737
          %755 = vmatprep.subr.bf16.mxu0 0
          %756 = vmatpush1.bf16.msra.mxu0 %v739
          %757 = vmatprep.subr.bf16.mxu0 0
          %758 = vmatpush1.bf16.msra.mxu0 %v740
          %759 = vmatprep.subr.bf16.mxu0 0
          %760 = vmatpush1.bf16.msra.mxu0 %v741
          %761 = vmatprep.subr.bf16.mxu0 0
          %762 = vmatpush1.bf16.msra.mxu0 %v742
          %763 = vmatprep.subr.bf16.mxu0 0
          %764 = vmatpush1.bf16.msra.mxu0 %v743
          %765 = vmatprep.subr.bf16.mxu0 0
          %766 = vmatpush1.bf16.msra.mxu0 %v744
          %767 = vmatprep.subr.bf16.mxu0 0
          %768 = vmatpush1.bf16.msra.mxu0 %v745
          %769 = vmatprep.subr.bf16.mxu0 0
          %770 = vmatpush1.bf16.msra.mxu0 %v746
          %771 = vmatprep.subr.bf16.mxu0 0
          %772 = vmatpush1.bf16.msra.mxu0 0
          %773 = vmatprep.subr.bf16.mxu0 0
          %774 = vmatpush1.bf16.msra.mxu0 0
          %775 = vmatprep.subr.bf16.mxu0 0
          %776 = vmatpush1.bf16.msra.mxu0 0
          %777 = vmatprep.subr.bf16.mxu0 0
          %778 = vmatpush1.bf16.msra.mxu0 0
          %779 = vmatprep.subr.bf16.mxu0 0
          %780 = vmatpush1.bf16.msra.mxu0 0
          %781 = vmatprep.subr.bf16.mxu0 0
          %782 = vmatpush1.bf16.msra.mxu0 0
          %783 = vmatprep.subr.bf16.mxu0 0
          %784 = vmatpush1.bf16.msra.mxu0 0
          %785 = vmatprep.subr.bf16.mxu0 0
          %786 = vmatpush1.bf16.msra.mxu0 0
          %787 = vmatprep.mubr.bf16.mxu0 0
          %788 = vmatmul.mubr.bf16.gmra.mrb[0].mxu0 %v690
          %v789 = vpop.f32.mrb[0].mxu0
          %v790 = vadd.f32 0.0, %v789
          %v791 = vpop.f32.mrb[0].mxu0
          %v792 = vpop.f32.mrb[0].mxu0
          %v793 = vadd.f32 0.0, %v792
          %v794 = vpop.f32.mrb[0].mxu0
          %795 = vdwg.mxu0
          %796 = vst [vmem:[%s474] sm:$0xff] %v790
          %797 = vst [vmem:[%s474 + $0x8] sm:$0xff] %v793
        $region85: #{forward.7} parent=72 // pred_fallthru
          _
        %s798 = smul.u32 2, %s20
        %p799 = scmp.lt.s32.totalorder %s21, 1
        %s800 = scalar_select %p799, %s21, 1
        %p801 = scmp.lt.s32.totalorder %s798, 1
        %s802 = scalar_select %p801, %s798, 1
        %s803 = smul.addr %s800, 2
        %s804 = sadd.s32 %s802, %s803
        %s805 = smul.addr %s804, 8
        %s806 = scalar_lea.vmem %s4, %s805
        // Predicated region
        $region86: #{forward.7} parent=72 // pred_check
          %p807 = pneg %p162
        $region87: #{forward.7} parent=72 // pred_check_branch
          %809 = sbr.rel (%p807) target = $region89
        $region88: #{forward.7} parent=72 // pred_region
          %s810 = smul.u32 2, %s20
        $region89: #{forward.7} parent=72 // pred_fallthru
          _
      $region73: #{forward.7} parent=5 // pred_fallthru
        _
      %p811 = scmp.le.s32.totalorder 2, %s10
      // Predicated region
      $region90: #{forward.7} parent=5 // pred_check
        %p812 = pneg %p811
      $region91: #{forward.7} parent=5 // pred_check_branch
        %814 = sbr.rel (%p812) target = $region93
      $region92: #{forward.7} parent=5 // pred_region
        %s815 = ssub.s32 %s10, 2
        // Predicated region
        $region94: #{forward.7} parent=92 // pred_check
          %p816 = pneg %p168
        $region95: #{forward.7} parent=92 // pred_check_branch
          %818 = sbr.rel (%p816) target = $region97
        $region96: #{forward.7} parent=92 // pred_region
          %s819 = smul.u32 2, %s23
          %p820 = scmp.lt.s32.totalorder %s24, 1
          %s821 = scalar_select %p820, %s24, 1
          %p822 = scmp.lt.s32.totalorder %s819, 1
          %s823 = scalar_select %p822, %s819, 1
          %s824 = smul.addr %s821, 2
          %s825 = sadd.s32 %s823, %s824
          %s826 = smul.addr %s825, 8
          %s827 = scalar_lea.vmem %s4, %s826
        $region97: #{forward.7} parent=92 // pred_fallthru
          _
      $region93: #{forward.7} parent=5 // pred_fallthru
        _
    $region6: #{forward.7} parent=1 // loop_footer
      %s14 = sadd.s32 1, %s10
    $region7: #{forward.7} parent=1 // loop_footer_branch
      %9 = sbr.rel target = $region3
    $region8: #{forward.7} parent=1 // loop_exit
      _

</llo_original>
